<compile_context>
chip_gen: v6e
topology: v6e:2x2x1
jax: 0.10.0
libtpu: 0.0.40
codegen_flags: <defaults>
</compile_context>

<pallas_src>
import jax
import jax.numpy as jnp
from jax.experimental import pallas as pl
from jax.experimental.pallas import tpu as pltpu

HIDDEN = 768
FC1 = 512
NUM_LABELS = 8   # len(label_map) — synthetic label map size


def _round_up(x, m):
    return (x + m - 1) // m * m


def head_kernel(x_ref, w1_ref, b1_ref, w2_ref, b2_ref, o_ref):
    # fc1: bf16 MXU matmul, f32 accumulation, bias + ReLU.
    x = x_ref[...]                                             # [TB, 768] bf16
    h = jnp.dot(x, w1_ref[...], preferred_element_type=jnp.float32)
    h = jnp.maximum(h + b1_ref[...], 0.0)                      # bias bcast [1,512]
    # Dropout(p=0.1): identity at inference time.
    # fc2: bf16 MXU matmul, f32 accumulation, bias (padded cols carry -1e30).
    logits = jnp.dot(h.astype(jnp.bfloat16), w2_ref[...],
                     preferred_element_type=jnp.float32)
    logits = logits + b2_ref[...]                              # bias bcast [1,LP]
    # LogSoftmax over the label axis, numerically stable.  Padded columns hold
    # ~-1e30 -> exp underflows to 0 -> they do not perturb the lse.
    m = jnp.max(logits, axis=-1, keepdims=True)
    s = logits - m
    lse = jnp.log(jnp.sum(jnp.exp(s), axis=-1, keepdims=True))
    o_ref[...] = s - lse


def _head_call(x, w1, b1, w2p, b2p, *, TB):
    """One pallas_call over `x` ([B,768] bf16), TB must divide B exactly."""
    B = x.shape[0]
    assert B % TB == 0
    LP = w2p.shape[1]
    grid = (B // TB,)

    cost = pl.CostEstimate(
        flops=2 * B * (HIDDEN * FC1 + FC1 * LP),
        transcendentals=B * (LP + 1),               # exp per logit + log per row
        bytes_accessed=(B * HIDDEN * 2               # x (bf16)
                        + HIDDEN * FC1 * 2           # w1 (bf16)
                        + FC1 * 4                    # b1 (f32)
                        + FC1 * LP * 2               # w2 (bf16, padded)
                        + LP * 4                     # b2 (f32, padded)
                        + B * LP * 4))               # out (f32)

    return pl.pallas_call(
        head_kernel,
        out_shape=jax.ShapeDtypeStruct((B, LP), jnp.float32),
        grid=grid,
        in_specs=[
            pl.BlockSpec((TB, HIDDEN), lambda i: (i, 0)),     # x tile per step
            pl.BlockSpec((HIDDEN, FC1), lambda i: (0, 0)),    # w1: VMEM-resident
            pl.BlockSpec((1, FC1), lambda i: (0, 0)),         # b1: VMEM-resident
            pl.BlockSpec((FC1, LP), lambda i: (0, 0)),        # w2: VMEM-resident
            pl.BlockSpec((1, LP), lambda i: (0, 0)),          # b2: VMEM-resident
        ],
        out_specs=pl.BlockSpec((TB, LP), lambda i: (i, 0)),
        compiler_params=pltpu.CompilerParams(
            dimension_semantics=("parallel",)),
        cost_estimate=cost,
    )(x, w1, b1, w2p, b2p)


def bert_arch_head(cls_hs, w1, b1, w2, b2):
    """Classification head of BERT_Arch.

    cls_hs: [B, 768] pooled [CLS] state (bf16 preferred — the backbone should
            emit bf16 so no standalone cast pass over x is needed).
    w1: [768, 512] (in, out);  b1: [1, 512];  w2: [512, L] (in, out);  b2: [1, L].
    Returns [B, L] f32 log-probabilities.
    """
    B = cls_hs.shape[0]
    L = w2.shape[1]

    if cls_hs.dtype != jnp.bfloat16:
        # Fallback; ideally the producer (backbone epilogue) emits bf16 directly.
        cls_hs = cls_hs.astype(jnp.bfloat16)

    # Lane-pad the fc2/output dimension to a multiple of 128.  Zero weight
    # columns + -1e30 bias keep the log-softmax over the real L labels exact.
    LP = _round_up(max(L, 128), 128)
    w1 = w1.astype(jnp.bfloat16)
    b1 = b1.astype(jnp.float32)
    if LP != L:
        w2p = jnp.zeros((FC1, LP), jnp.bfloat16).at[:, :L].set(w2.astype(jnp.bfloat16))
        b2p = jnp.full((1, LP), -1e30, jnp.float32).at[:, :L].set(b2.astype(jnp.float32))
    else:
        w2p = w2.astype(jnp.bfloat16)
        b2p = b2.astype(jnp.float32)

    # Batch tiling: single full-array block for small B (no padding at all);
    # for B >= 512 use TB in {256, 512} so there are >=2 parallel grid steps
    # (v7x dual TensorCores) and tiles fill the 256-wide MXU (v6e/v7x).
    # Remainder rows get their own un-padded single-block call.
    if B <= 512:
        parts = [_head_call(cls_hs, w1, b1, w2p, b2p, TB=B)]
    else:
        TB = 512 if B >= 1024 else 256
        B_main = (B // TB) * TB
        parts = [_head_call(cls_hs[:B_main], w1, b1, w2p, b2p, TB=TB)]
        if B_main != B:
            parts.append(_head_call(cls_hs[B_main:], w1, b1, w2p, b2p, TB=B - B_main))

    out = parts[0] if len(parts) == 1 else jnp.concatenate(parts, axis=0)
    return out[:, :L]


def reference_head(cls_hs, w1, b1, w2, b2):
    # Pure-JAX reference mirroring the kernel's precision choices
    # (bf16 operands, f32 accumulation).
    x = cls_hs.astype(jnp.bfloat16)
    h = jnp.dot(x, w1.astype(jnp.bfloat16),
                preferred_element_type=jnp.float32) + b1.astype(jnp.float32)
    h = jnp.maximum(h, 0.0)
    logits = jnp.dot(h.astype(jnp.bfloat16), w2.astype(jnp.bfloat16),
                     preferred_element_type=jnp.float32) + b2.astype(jnp.float32)
    return jax.nn.log_softmax(logits, axis=1)


if __name__ == "__main__":
    key = jax.random.PRNGKey(0)
    k_x, k_w1, k_b1, k_w2, k_b2 = jax.random.split(key, 5)

    B = 2
    # Pooled [CLS] hidden state produced by the (external) BERT backbone,
    # emitted in bf16 so the head streams half the bytes.
    cls_hs = jax.random.normal(k_x, (B, HIDDEN), dtype=jnp.float32).astype(jnp.bfloat16)

    # Deterministic parameter init (fc1 768->512, fc2 512->L), weights stored
    # pre-transposed as (in, out).
    w1 = (jax.random.normal(k_w1, (HIDDEN, FC1), dtype=jnp.float32)
          * (1.0 / HIDDEN) ** 0.5).astype(jnp.bfloat16)
    b1 = jax.random.normal(k_b1, (1, FC1), dtype=jnp.float32) * 0.01
    w2 = (jax.random.normal(k_w2, (FC1, NUM_LABELS), dtype=jnp.float32)
          * (1.0 / FC1) ** 0.5).astype(jnp.bfloat16)
    b2 = jax.random.normal(k_b2, (1, NUM_LABELS), dtype=jnp.float32) * 0.01

    out = bert_arch_head(cls_hs, w1, b1, w2, b2)
    out = jax.block_until_ready(out)

    ref = reference_head(cls_hs, w1, b1, w2, b2)
    assert out.shape == (B, NUM_LABELS)
    assert bool(jnp.all(jnp.isfinite(out)))
    assert jnp.allclose(out, ref, atol=2e-2, rtol=2e-2), (
        float(jnp.max(jnp.abs(out - ref))))

    print("KERNEL_OK")
</pallas_src>

<mosaic_0001>
module attributes {stable_mosaic.version = 11 : i64} {
  func.func @head_kernel(%arg0: i32, %arg1: memref<2x768xbf16, #tpu.memory_space<vmem>>, %arg2: memref<768x512xbf16, #tpu.memory_space<vmem>>, %arg3: memref<1x512xf32, #tpu.memory_space<vmem>>, %arg4: memref<512x128xbf16, #tpu.memory_space<vmem>>, %arg5: memref<1x128xf32, #tpu.memory_space<vmem>>, %arg6: memref<2x128xf32, #tpu.memory_space<vmem>>) attributes {dimension_semantics = [#tpu.dimension_semantics<parallel>], iteration_bounds = array<i64: 1>, scalar_prefetch = 0 : i64, scratch_operands = 0 : i64, tpu.core_type = #tpu.core_type<tc>, window_params = [{transform_indices = @transform_0, window_bounds = array<i64: 2, 768>}, {pipeline_mode = #tpu.pipeline_mode<synchronous>, transform_indices = @transform_1, window_bounds = array<i64: 768, 512>}, {pipeline_mode = #tpu.pipeline_mode<synchronous>, transform_indices = @transform_2, window_bounds = array<i64: 1, 512>}, {pipeline_mode = #tpu.pipeline_mode<synchronous>, transform_indices = @transform_3, window_bounds = array<i64: 512, 128>}, {pipeline_mode = #tpu.pipeline_mode<synchronous>, transform_indices = @transform_4, window_bounds = array<i64: 1, 128>}, {transform_indices = @transform_5, window_bounds = array<i64: 2, 128>}]} {
    %c0 = arith.constant 0 : index
    %c0_0 = arith.constant 0 : index
    %0 = vector.load %arg1[%c0, %c0_0] : memref<2x768xbf16, #tpu.memory_space<vmem>>, vector<2x768xbf16>
    %c0_1 = arith.constant 0 : index
    %c0_2 = arith.constant 0 : index
    %1 = vector.load %arg2[%c0_1, %c0_2] : memref<768x512xbf16, #tpu.memory_space<vmem>>, vector<768x512xbf16>
    %cst = arith.constant dense<0.000000e+00> : vector<2x512xf32>
    %2 = tpu.matmul %0, %1, %cst {dimension_numbers = #tpu.dot_dimension_numbers<[1], [0], [0], [1], [0, 0, 1, 1], [], []>} : vector<2x768xbf16>, vector<768x512xbf16>, vector<2x512xf32> -> vector<2x512xf32>
    %c0_3 = arith.constant 0 : index
    %c0_4 = arith.constant 0 : index
    %3 = vector.load %arg3[%c0_3, %c0_4] : memref<1x512xf32, #tpu.memory_space<vmem>>, vector<1x512xf32>
    %4 = vector.broadcast %3 : vector<1x512xf32> to vector<2x512xf32>
    %5 = arith.addf %2, %4 : vector<2x512xf32>
    %cst_5 = arith.constant 0.000000e+00 : f32
    %6 = vector.broadcast %cst_5 : f32 to vector<2x512xf32>
    %7 = arith.maximumf %5, %6 : vector<2x512xf32>
    %8 = arith.truncf %7 : vector<2x512xf32> to vector<2x512xbf16>
    %c0_6 = arith.constant 0 : index
    %c0_7 = arith.constant 0 : index
    %9 = vector.load %arg4[%c0_6, %c0_7] : memref<512x128xbf16, #tpu.memory_space<vmem>>, vector<512x128xbf16>
    %cst_8 = arith.constant dense<0.000000e+00> : vector<2x128xf32>
    %10 = tpu.matmul %8, %9, %cst_8 {dimension_numbers = #tpu.dot_dimension_numbers<[1], [0], [0], [1], [0, 0, 1, 1], [], []>} : vector<2x512xbf16>, vector<512x128xbf16>, vector<2x128xf32> -> vector<2x128xf32>
    %c0_9 = arith.constant 0 : index
    %c0_10 = arith.constant 0 : index
    %11 = vector.load %arg5[%c0_9, %c0_10] : memref<1x128xf32, #tpu.memory_space<vmem>>, vector<1x128xf32>
    %12 = vector.broadcast %11 : vector<1x128xf32> to vector<2x128xf32>
    %13 = arith.addf %10, %12 : vector<2x128xf32>
    %cst_11 = arith.constant dense<0xFF800000> : vector<2xf32>
    %14 = vector.multi_reduction <maximumf>, %13, %cst_11 [1] : vector<2x128xf32> to vector<2xf32>
    %15 = vector.shape_cast %14 : vector<2xf32> to vector<2x1xf32>
    %16 = vector.broadcast %15 : vector<2x1xf32> to vector<2x128xf32>
    %17 = arith.subf %13, %16 : vector<2x128xf32>
    %18 = math.exp %17 : vector<2x128xf32>
    %cst_12 = arith.constant dense<0.000000e+00> : vector<2xf32>
    %19 = vector.multi_reduction <add>, %18, %cst_12 [1] : vector<2x128xf32> to vector<2xf32>
    %20 = vector.shape_cast %19 : vector<2xf32> to vector<2x1xf32>
    %21 = math.log %20 : vector<2x1xf32>
    %22 = vector.broadcast %21 : vector<2x1xf32> to vector<2x128xf32>
    %23 = arith.subf %17, %22 : vector<2x128xf32>
    %c0_13 = arith.constant 0 : index
    %c0_14 = arith.constant 0 : index
    %24 = vector.load %arg6[%c0_13, %c0_14] : memref<2x128xf32, #tpu.memory_space<vmem>>, vector<2x128xf32>
    tpu.vector_store %arg6[%c0_13, %c0_14], %23 {strides = array<i32>} : memref<2x128xf32, #tpu.memory_space<vmem>>, vector<2x128xf32>,
    return
  }
  func.func @transform_0(%arg0: i32) -> (i32, i32) {
    %c0_i32 = arith.constant 0 : i32
    %c0_i32_0 = arith.constant 0 : i32
    return %arg0, %c0_i32 : i32, i32
  }
  func.func @transform_1(%arg0: i32) -> (i32, i32) {
    %c0_i32 = arith.constant 0 : i32
    %c0_i32_0 = arith.constant 0 : i32
    %c0_i32_1 = arith.constant 0 : i32
    return %c0_i32, %c0_i32_0 : i32, i32
  }
  func.func @transform_2(%arg0: i32) -> (i32, i32) {
    %c0_i32 = arith.constant 0 : i32
    %c0_i32_0 = arith.constant 0 : i32
    %c0_i32_1 = arith.constant 0 : i32
    return %c0_i32, %c0_i32_0 : i32, i32
  }
  func.func @transform_3(%arg0: i32) -> (i32, i32) {
    %c0_i32 = arith.constant 0 : i32
    %c0_i32_0 = arith.constant 0 : i32
    %c0_i32_1 = arith.constant 0 : i32
    return %c0_i32, %c0_i32_0 : i32, i32
  }
  func.func @transform_4(%arg0: i32) -> (i32, i32) {
    %c0_i32 = arith.constant 0 : i32
    %c0_i32_0 = arith.constant 0 : i32
    %c0_i32_1 = arith.constant 0 : i32
    return %c0_i32, %c0_i32_0 : i32, i32
  }
  func.func @transform_5(%arg0: i32) -> (i32, i32) {
    %c0_i32 = arith.constant 0 : i32
    %c0_i32_0 = arith.constant 0 : i32
    return %arg0, %c0_i32 : i32, i32
  }
}

</mosaic_0001>

<llo_original>
// kernel: tpu_custom_call.1
$region0: #{tpu_custom_call.1}
  #allocation0 [shape = 'u32[]', space=smem, size = 0x4, offset = 0x4, fixed_abs, tag = 'smem constant byte address 0x4 - core index']
  #allocation1 [shape = 'u32[144,128]{1,0:T(1,128)}', space=vmem, size = 0x12000, scoped, tag = 'internal scratch']
  %s0 = inlined_call_operand.hbm [shape: bf16[2,768], index: 0, kind: input, shape index: {}]
  %s1 = inlined_call_operand.hbm [shape: bf16[768,512], index: 1, kind: input, shape index: {}]
  %s2 = inlined_call_operand.hbm [shape: f32[1,512], index: 2, kind: input, shape index: {}]
  %s3 = inlined_call_operand.hbm [shape: bf16[512,128], index: 3, kind: input, shape index: {}]
  %s4 = inlined_call_operand.vmem [shape: f32[1,128], index: 4, kind: input, shape index: {}]
  %s5 = inlined_call_operand.hbm [shape: f32[2,128], index: 5, kind: output, shape index: {}]
  %s6 = sld [smem:[#allocation0]]
  $region46: #{tpu_custom_call.1} parent=0
    _
  %s8 = ssub.s32 1, %s6
  %s9 = scalar_select 0, %s8, %s6
  $region1: #{tpu_custom_call.1} parent=0
    #allocation2 [shape = 'u8[3072]{0}', space=vmem, size = 0xc00, scoped, tag = 'input window, operand 0, single buffered']
    #allocation3 [shape = 's32[1]{0}', space=sflag, size = 0x4, scoped, tag = 'scoped memory for tpu_custom_call.1']
    #allocation4 [shape = 's32[1]{0}', space=sflag, size = 0x4, scoped, tag = 'scoped memory for tpu_custom_call.1']
    #allocation5 [shape = 'u8[786432]{0}', space=vmem, size = 0xc0000, scoped, tag = 'input window, operand 1, single buffered']
    #allocation6 [shape = 's32[1]{0}', space=sflag, size = 0x4, scoped, tag = 'scoped memory for tpu_custom_call.1']
    #allocation7 [shape = 'u8[2048]{0}', space=vmem, size = 0x800, scoped, tag = 'input window, operand 2, single buffered']
    #allocation8 [shape = 'u8[131072]{0}', space=vmem, size = 0x20000, scoped, tag = 'input window, operand 3, single buffered']
    #allocation9 [shape = 's32[1]{0}', space=sflag, size = 0x4, scoped, tag = 'scoped memory for tpu_custom_call.1']
    #allocation10 [shape = 'u8[1024]{0}', space=vmem, size = 0x400, scoped, tag = 'output window, operand 0, single buffered']
    %10 = vsyncpa [#allocation3], 0
    %11 = vsyncpa [#allocation6], 0
    %12 = vsyncpa [#allocation9], 0
    %13 = vsyncpa [#allocation4], 0
    // Predicated region
    $region2: #{tpu_custom_call.1} parent=1 // pred_check
      _
    $region3: #{tpu_custom_call.1} parent=1 // pred_check_branch
      %15 = sbr.rel (0) target = $region5
    $region4: #{tpu_custom_call.1} parent=1 // pred_region
      %s17 = ssub.s32 96, 96
      %18 = vsyncadd [#allocation3], %s17
      %s20 = sshll.u32 [#allocation2], 4
      %s21 = int_to_ptr.vmem [resolvable:$true] %s20
      %23 = dma.hbm_to_vmem [thread:$0]  %s0, 96, %s21, [#allocation3]
    $region5: #{tpu_custom_call.1} parent=1 // pred_fallthru
      _
    // Predicated region
    $region6: #{tpu_custom_call.1} parent=1 // pred_check
      _
    $region7: #{tpu_custom_call.1} parent=1 // pred_check_branch
      %25 = sbr.rel (0) target = $region9
    $region8: #{tpu_custom_call.1} parent=1 // pred_region
      %s27 = ssub.s32 24576, 24576
      %28 = vsyncadd [#allocation6], %s27
      %s29 = sshll.u32 [#allocation5], 4
      %s30 = int_to_ptr.vmem [resolvable:$true] %s29
      %35 = dma.hbm_to_vmem [thread:$0]  %s1, 24576, %s30, [#allocation6], 256, 256, 16
    $region9: #{tpu_custom_call.1} parent=1 // pred_fallthru
      _
    // Predicated region
    $region10: #{tpu_custom_call.1} parent=1 // pred_check
      _
    $region11: #{tpu_custom_call.1} parent=1 // pred_check_branch
      %37 = sbr.rel (0) target = $region13
    $region12: #{tpu_custom_call.1} parent=1 // pred_region
      %s39 = ssub.s32 64, 64
      %40 = vsyncadd [#allocation6], %s39
      %s42 = sshll.u32 [#allocation7], 4
      %s43 = int_to_ptr.vmem [resolvable:$true] %s42
      %45 = dma.hbm_to_vmem [thread:$0]  %s2, 64, %s43, [#allocation6]
    $region13: #{tpu_custom_call.1} parent=1 // pred_fallthru
      _
    // Predicated region
    $region14: #{tpu_custom_call.1} parent=1 // pred_check
      _
    $region15: #{tpu_custom_call.1} parent=1 // pred_check_branch
      %47 = sbr.rel (0) target = $region17
    $region16: #{tpu_custom_call.1} parent=1 // pred_region
      %s49 = ssub.s32 4096, 4096
      %50 = vsyncadd [#allocation9], %s49
      %s51 = sshll.u32 [#allocation8], 4
      %s52 = int_to_ptr.vmem [resolvable:$true] %s51
      %57 = dma.hbm_to_vmem [thread:$0]  %s3, 4096, %s52, [#allocation9], 64, 64, 4
    $region17: #{tpu_custom_call.1} parent=1 // pred_fallthru
      _
    // Predicated region
    $region18: #{tpu_custom_call.1} parent=1 // pred_check
      _
    $region19: #{tpu_custom_call.1} parent=1 // pred_check_branch
      %59 = sbr.rel (0) target = $region21
    $region20: #{tpu_custom_call.1} parent=1 // pred_region
      _
    $region21: #{tpu_custom_call.1} parent=1 // pred_fallthru
      _
    // Predicated region
    $region22: #{tpu_custom_call.1} parent=1 // pred_check
      _
    $region23: #{tpu_custom_call.1} parent=1 // pred_check_branch
      %61 = sbr.rel (0) target = $region25
    $region24: #{tpu_custom_call.1} parent=1 // pred_region
      %62 = dma.done [#allocation3], 96
    $region25: #{tpu_custom_call.1} parent=1 // pred_fallthru
      _
    // Predicated region
    $region26: #{tpu_custom_call.1} parent=1 // pred_check
      _
    $region27: #{tpu_custom_call.1} parent=1 // pred_check_branch
      %64 = sbr.rel (0) target = $region29
    $region28: #{tpu_custom_call.1} parent=1 // pred_region
      %65 = dma.done [#allocation6], 24576
    $region29: #{tpu_custom_call.1} parent=1 // pred_fallthru
      _
    // Predicated region
    $region30: #{tpu_custom_call.1} parent=1 // pred_check
      _
    $region31: #{tpu_custom_call.1} parent=1 // pred_check_branch
      %67 = sbr.rel (0) target = $region33
    $region32: #{tpu_custom_call.1} parent=1 // pred_region
      %68 = dma.done [#allocation6], 64
    $region33: #{tpu_custom_call.1} parent=1 // pred_fallthru
      _
    // Predicated region
    $region34: #{tpu_custom_call.1} parent=1 // pred_check
      _
    $region35: #{tpu_custom_call.1} parent=1 // pred_check_branch
      %70 = sbr.rel (0) target = $region37
    $region36: #{tpu_custom_call.1} parent=1 // pred_region
      %71 = dma.done [#allocation9], 4096
    $region37: #{tpu_custom_call.1} parent=1 // pred_fallthru
      _
    %v73 = vld [vmem:[#allocation2] sm:$0x3f]
    %v74 = vld [vmem:[#allocation5] sm:$0xff]
    %v75 = vld [vmem:[#allocation5 + $0x8] sm:$0xff]
    %v76 = vld [vmem:[#allocation5 + $0x10] sm:$0xff]
    %v77 = vld [vmem:[#allocation5 + $0x18] sm:$0xff]
    %v78 = vld [vmem:[#allocation5 + $0x20] sm:$0xff]
    %v79 = vld [vmem:[#allocation5 + $0x28] sm:$0xff]
    %v80 = vld [vmem:[#allocation5 + $0x30] sm:$0xff]
    %v81 = vld [vmem:[#allocation5 + $0x38] sm:$0xff]
    %v82 = vld [vmem:[#allocation5 + $0x40] sm:$0xff]
    %v83 = vld [vmem:[#allocation5 + $0x48] sm:$0xff]
    %v84 = vld [vmem:[#allocation5 + $0x50] sm:$0xff]
    %v85 = vld [vmem:[#allocation5 + $0x58] sm:$0xff]
    %v86 = vld [vmem:[#allocation5 + $0x60] sm:$0xff]
    %v87 = vld [vmem:[#allocation5 + $0x68] sm:$0xff]
    %v88 = vld [vmem:[#allocation5 + $0x70] sm:$0xff]
    %v89 = vld [vmem:[#allocation5 + $0x78] sm:$0xff]
    %v90 = vld [vmem:[#allocation5 + $0x80] sm:$0xff]
    %v91 = vld [vmem:[#allocation5 + $0x88] sm:$0xff]
    %v92 = vld [vmem:[#allocation5 + $0x90] sm:$0xff]
    %v93 = vld [vmem:[#allocation5 + $0x98] sm:$0xff]
    %v94 = vld [vmem:[#allocation5 + $0xa0] sm:$0xff]
    %v95 = vld [vmem:[#allocation5 + $0xa8] sm:$0xff]
    %v96 = vld [vmem:[#allocation5 + $0xb0] sm:$0xff]
    %v97 = vld [vmem:[#allocation5 + $0xb8] sm:$0xff]
    %v98 = vld [vmem:[#allocation5 + $0xc0] sm:$0xff]
    %v99 = vld [vmem:[#allocation5 + $0xc8] sm:$0xff]
    %v100 = vld [vmem:[#allocation5 + $0xd0] sm:$0xff]
    %v101 = vld [vmem:[#allocation5 + $0xd8] sm:$0xff]
    %v102 = vld [vmem:[#allocation5 + $0xe0] sm:$0xff]
    %v103 = vld [vmem:[#allocation5 + $0xe8] sm:$0xff]
    %v104 = vld [vmem:[#allocation5 + $0xf0] sm:$0xff]
    %v105 = vld [vmem:[#allocation5 + $0xf8] sm:$0xff]
    %v106 = vld [vmem:[#allocation5 + $0x100] sm:$0xff]
    %v107 = vld [vmem:[#allocation5 + $0x108] sm:$0xff]
    %v108 = vld [vmem:[#allocation5 + $0x110] sm:$0xff]
    %v109 = vld [vmem:[#allocation5 + $0x118] sm:$0xff]
    %v110 = vld [vmem:[#allocation5 + $0x120] sm:$0xff]
    %v111 = vld [vmem:[#allocation5 + $0x128] sm:$0xff]
    %v112 = vld [vmem:[#allocation5 + $0x130] sm:$0xff]
    %v113 = vld [vmem:[#allocation5 + $0x138] sm:$0xff]
    %v114 = vld [vmem:[#allocation5 + $0x140] sm:$0xff]
    %v115 = vld [vmem:[#allocation5 + $0x148] sm:$0xff]
    %v116 = vld [vmem:[#allocation5 + $0x150] sm:$0xff]
    %v117 = vld [vmem:[#allocation5 + $0x158] sm:$0xff]
    %v118 = vld [vmem:[#allocation5 + $0x160] sm:$0xff]
    %v119 = vld [vmem:[#allocation5 + $0x168] sm:$0xff]
    %v120 = vld [vmem:[#allocation5 + $0x170] sm:$0xff]
    %v121 = vld [vmem:[#allocation5 + $0x178] sm:$0xff]
    %v122 = vld [vmem:[#allocation5 + $0x180] sm:$0xff]
    %v123 = vld [vmem:[#allocation5 + $0x188] sm:$0xff]
    %v124 = vld [vmem:[#allocation5 + $0x190] sm:$0xff]
    %v125 = vld [vmem:[#allocation5 + $0x198] sm:$0xff]
    %v126 = vld [vmem:[#allocation5 + $0x1a0] sm:$0xff]
    %v127 = vld [vmem:[#allocation5 + $0x1a8] sm:$0xff]
    %v128 = vld [vmem:[#allocation5 + $0x1b0] sm:$0xff]
    %v129 = vld [vmem:[#allocation5 + $0x1b8] sm:$0xff]
    %v130 = vld [vmem:[#allocation5 + $0x1c0] sm:$0xff]
    %v131 = vld [vmem:[#allocation5 + $0x1c8] sm:$0xff]
    %v132 = vld [vmem:[#allocation5 + $0x1d0] sm:$0xff]
    %v133 = vld [vmem:[#allocation5 + $0x1d8] sm:$0xff]
    %v134 = vld [vmem:[#allocation5 + $0x1e0] sm:$0xff]
    %v135 = vld [vmem:[#allocation5 + $0x1e8] sm:$0xff]
    %v136 = vld [vmem:[#allocation5 + $0x1f0] sm:$0xff]
    %v137 = vld [vmem:[#allocation5 + $0x1f8] sm:$0xff]
    %v138 = vld [vmem:[#allocation5 + $0x200] sm:$0xff]
    %v139 = vld [vmem:[#allocation5 + $0x208] sm:$0xff]
    %v140 = vld [vmem:[#allocation5 + $0x210] sm:$0xff]
    %v141 = vld [vmem:[#allocation5 + $0x218] sm:$0xff]
    %v142 = vld [vmem:[#allocation5 + $0x220] sm:$0xff]
    %v143 = vld [vmem:[#allocation5 + $0x228] sm:$0xff]
    %v144 = vld [vmem:[#allocation5 + $0x230] sm:$0xff]
    %v145 = vld [vmem:[#allocation5 + $0x238] sm:$0xff]
    %v146 = vld [vmem:[#allocation5 + $0x240] sm:$0xff]
    %v147 = vld [vmem:[#allocation5 + $0x248] sm:$0xff]
    %v148 = vld [vmem:[#allocation5 + $0x250] sm:$0xff]
    %v149 = vld [vmem:[#allocation5 + $0x258] sm:$0xff]
    %v150 = vld [vmem:[#allocation5 + $0x260] sm:$0xff]
    %v151 = vld [vmem:[#allocation5 + $0x268] sm:$0xff]
    %v152 = vld [vmem:[#allocation5 + $0x270] sm:$0xff]
    %v153 = vld [vmem:[#allocation5 + $0x278] sm:$0xff]
    %v154 = vld [vmem:[#allocation5 + $0x280] sm:$0xff]
    %v155 = vld [vmem:[#allocation5 + $0x288] sm:$0xff]
    %v156 = vld [vmem:[#allocation5 + $0x290] sm:$0xff]
    %v157 = vld [vmem:[#allocation5 + $0x298] sm:$0xff]
    %v158 = vld [vmem:[#allocation5 + $0x2a0] sm:$0xff]
    %v159 = vld [vmem:[#allocation5 + $0x2a8] sm:$0xff]
    %v160 = vld [vmem:[#allocation5 + $0x2b0] sm:$0xff]
    %v161 = vld [vmem:[#allocation5 + $0x2b8] sm:$0xff]
    %v162 = vld [vmem:[#allocation5 + $0x2c0] sm:$0xff]
    %v163 = vld [vmem:[#allocation5 + $0x2c8] sm:$0xff]
    %v164 = vld [vmem:[#allocation5 + $0x2d0] sm:$0xff]
    %v165 = vld [vmem:[#allocation5 + $0x2d8] sm:$0xff]
    %v166 = vld [vmem:[#allocation5 + $0x2e0] sm:$0xff]
    %v167 = vld [vmem:[#allocation5 + $0x2e8] sm:$0xff]
    %v168 = vld [vmem:[#allocation5 + $0x2f0] sm:$0xff]
    %v169 = vld [vmem:[#allocation5 + $0x2f8] sm:$0xff]
    %v170 = vld [vmem:[#allocation5 + $0x300] sm:$0xff]
    %v171 = vld [vmem:[#allocation5 + $0x308] sm:$0xff]
    %v172 = vld [vmem:[#allocation5 + $0x310] sm:$0xff]
    %v173 = vld [vmem:[#allocation5 + $0x318] sm:$0xff]
    %v174 = vld [vmem:[#allocation5 + $0x320] sm:$0xff]
    %v175 = vld [vmem:[#allocation5 + $0x328] sm:$0xff]
    %v176 = vld [vmem:[#allocation5 + $0x330] sm:$0xff]
    %v177 = vld [vmem:[#allocation5 + $0x338] sm:$0xff]
    %v178 = vld [vmem:[#allocation5 + $0x340] sm:$0xff]
    %v179 = vld [vmem:[#allocation5 + $0x348] sm:$0xff]
    %v180 = vld [vmem:[#allocation5 + $0x350] sm:$0xff]
    %v181 = vld [vmem:[#allocation5 + $0x358] sm:$0xff]
    %v182 = vld [vmem:[#allocation5 + $0x360] sm:$0xff]
    %v183 = vld [vmem:[#allocation5 + $0x368] sm:$0xff]
    %v184 = vld [vmem:[#allocation5 + $0x370] sm:$0xff]
    %v185 = vld [vmem:[#allocation5 + $0x378] sm:$0xff]
    %v186 = vld [vmem:[#allocation5 + $0x380] sm:$0xff]
    %v187 = vld [vmem:[#allocation5 + $0x388] sm:$0xff]
    %v188 = vld [vmem:[#allocation5 + $0x390] sm:$0xff]
    %v189 = vld [vmem:[#allocation5 + $0x398] sm:$0xff]
    %v190 = vld [vmem:[#allocation5 + $0x3a0] sm:$0xff]
    %v191 = vld [vmem:[#allocation5 + $0x3a8] sm:$0xff]
    %v192 = vld [vmem:[#allocation5 + $0x3b0] sm:$0xff]
    %v193 = vld [vmem:[#allocation5 + $0x3b8] sm:$0xff]
    %v194 = vld [vmem:[#allocation5 + $0x3c0] sm:$0xff]
    %v195 = vld [vmem:[#allocation5 + $0x3c8] sm:$0xff]
    %v196 = vld [vmem:[#allocation5 + $0x3d0] sm:$0xff]
    %v197 = vld [vmem:[#allocation5 + $0x3d8] sm:$0xff]
    %v198 = vld [vmem:[#allocation5 + $0x3e0] sm:$0xff]
    %v199 = vld [vmem:[#allocation5 + $0x3e8] sm:$0xff]
    %v200 = vld [vmem:[#allocation5 + $0x3f0] sm:$0xff]
    %v201 = vld [vmem:[#allocation5 + $0x3f8] sm:$0xff]
    %v202 = vld [vmem:[#allocation5 + $0x400] sm:$0xff]
    %v203 = vld [vmem:[#allocation5 + $0x408] sm:$0xff]
    %v204 = vld [vmem:[#allocation5 + $0x410] sm:$0xff]
    %v205 = vld [vmem:[#allocation5 + $0x418] sm:$0xff]
    %v206 = vld [vmem:[#allocation5 + $0x420] sm:$0xff]
    %v207 = vld [vmem:[#allocation5 + $0x428] sm:$0xff]
    %v208 = vld [vmem:[#allocation5 + $0x430] sm:$0xff]
    %v209 = vld [vmem:[#allocation5 + $0x438] sm:$0xff]
    %v210 = vld [vmem:[#allocation5 + $0x440] sm:$0xff]
    %v211 = vld [vmem:[#allocation5 + $0x448] sm:$0xff]
    %v212 = vld [vmem:[#allocation5 + $0x450] sm:$0xff]
    %v213 = vld [vmem:[#allocation5 + $0x458] sm:$0xff]
    %v214 = vld [vmem:[#allocation5 + $0x460] sm:$0xff]
    %v215 = vld [vmem:[#allocation5 + $0x468] sm:$0xff]
    %v216 = vld [vmem:[#allocation5 + $0x470] sm:$0xff]
    %v217 = vld [vmem:[#allocation5 + $0x478] sm:$0xff]
    %v218 = vld [vmem:[#allocation5 + $0x480] sm:$0xff]
    %v219 = vld [vmem:[#allocation5 + $0x488] sm:$0xff]
    %v220 = vld [vmem:[#allocation5 + $0x490] sm:$0xff]
    %v221 = vld [vmem:[#allocation5 + $0x498] sm:$0xff]
    %v222 = vld [vmem:[#allocation5 + $0x4a0] sm:$0xff]
    %v223 = vld [vmem:[#allocation5 + $0x4a8] sm:$0xff]
    %v224 = vld [vmem:[#allocation5 + $0x4b0] sm:$0xff]
    %v225 = vld [vmem:[#allocation5 + $0x4b8] sm:$0xff]
    %v226 = vld [vmem:[#allocation5 + $0x4c0] sm:$0xff]
    %v227 = vld [vmem:[#allocation5 + $0x4c8] sm:$0xff]
    %v228 = vld [vmem:[#allocation5 + $0x4d0] sm:$0xff]
    %v229 = vld [vmem:[#allocation5 + $0x4d8] sm:$0xff]
    %v230 = vld [vmem:[#allocation5 + $0x4e0] sm:$0xff]
    %v231 = vld [vmem:[#allocation5 + $0x4e8] sm:$0xff]
    %v232 = vld [vmem:[#allocation5 + $0x4f0] sm:$0xff]
    %v233 = vld [vmem:[#allocation5 + $0x4f8] sm:$0xff]
    %v234 = vld [vmem:[#allocation5 + $0x500] sm:$0xff]
    %v235 = vld [vmem:[#allocation5 + $0x508] sm:$0xff]
    %v236 = vld [vmem:[#allocation5 + $0x510] sm:$0xff]
    %v237 = vld [vmem:[#allocation5 + $0x518] sm:$0xff]
    %v238 = vld [vmem:[#allocation5 + $0x520] sm:$0xff]
    %v239 = vld [vmem:[#allocation5 + $0x528] sm:$0xff]
    %v240 = vld [vmem:[#allocation5 + $0x530] sm:$0xff]
    %v241 = vld [vmem:[#allocation5 + $0x538] sm:$0xff]
    %v242 = vld [vmem:[#allocation5 + $0x540] sm:$0xff]
    %v243 = vld [vmem:[#allocation5 + $0x548] sm:$0xff]
    %v244 = vld [vmem:[#allocation5 + $0x550] sm:$0xff]
    %v245 = vld [vmem:[#allocation5 + $0x558] sm:$0xff]
    %v246 = vld [vmem:[#allocation5 + $0x560] sm:$0xff]
    %v247 = vld [vmem:[#allocation5 + $0x568] sm:$0xff]
    %v248 = vld [vmem:[#allocation5 + $0x570] sm:$0xff]
    %v249 = vld [vmem:[#allocation5 + $0x578] sm:$0xff]
    %v250 = vld [vmem:[#allocation5 + $0x580] sm:$0xff]
    %v251 = vld [vmem:[#allocation5 + $0x588] sm:$0xff]
    %v252 = vld [vmem:[#allocation5 + $0x590] sm:$0xff]
    %v253 = vld [vmem:[#allocation5 + $0x598] sm:$0xff]
    %v254 = vld [vmem:[#allocation5 + $0x5a0] sm:$0xff]
    %v255 = vld [vmem:[#allocation5 + $0x5a8] sm:$0xff]
    %v256 = vld [vmem:[#allocation5 + $0x5b0] sm:$0xff]
    %v257 = vld [vmem:[#allocation5 + $0x5b8] sm:$0xff]
    %v258 = vld [vmem:[#allocation5 + $0x5c0] sm:$0xff]
    %v259 = vld [vmem:[#allocation5 + $0x5c8] sm:$0xff]
    %v260 = vld [vmem:[#allocation5 + $0x5d0] sm:$0xff]
    %v261 = vld [vmem:[#allocation5 + $0x5d8] sm:$0xff]
    %v262 = vld [vmem:[#allocation5 + $0x5e0] sm:$0xff]
    %v263 = vld [vmem:[#allocation5 + $0x5e8] sm:$0xff]
    %v264 = vld [vmem:[#allocation5 + $0x5f0] sm:$0xff]
    %v265 = vld [vmem:[#allocation5 + $0x5f8] sm:$0xff]
    %v266 = vld [vmem:[#allocation7] sm:$0xf]
    %v268 = vlaneseq
    %v269 = vshrl.u32 %v268, 7
    %v270 = vsub.s32 0, %v269
    %v271 = vrot.slane %v266, %v270
    %v272 = vlaneseq
    %v273 = vshrl.u32 %v272, 7
    %v274 = vsub.s32 1, %v273
    %v275 = vrot.slane %v266, %v274
    %v276 = vlaneseq
    %v277 = vshrl.u32 %v276, 7
    %v278 = vsub.s32 2, %v277
    %v279 = vrot.slane %v266, %v278
    %v280 = vlaneseq
    %v281 = vshrl.u32 %v280, 7
    %v282 = vsub.s32 3, %v281
    %v283 = vrot.slane %v266, %v282
    %v289 = vcombine.high %v73, %v73
    %v291 = vunpack.c.l.s4 1966171168
    %v292 = vunpack.c.0.s8 %v291
    %v293 = vlaneseq
    %v294 = vshrl.u32 %v293, 7
    %v295 = vsub.s32 %v292, %v294
    %v296 = vrot.slane %v73, %v295
    %v298 = vunpack.c.l.s4 1966171168
    %v299 = vunpack.c.0.s8 %v298
    %v300 = vlaneseq
    %v301 = vshrl.u32 %v300, 7
    %v302 = vsub.s32 %v299, %v301
    %v303 = vrot.slane %v289, %v302
    %v304 = vcombine.high %v296, %v296
    %v305 = vcombine.high %v303, %v303
    %v307 = vunpack.c.l.s4 1966171168
    %v308 = vunpack.c.0.s8 %v307
    %v309 = vlaneseq
    %v310 = vshrl.u32 %v309, 7
    %v311 = vsub.s32 %v308, %v310
    %v312 = vrot.slane %v296, %v311
    %v314 = vunpack.c.l.s4 1966171168
    %v315 = vunpack.c.0.s8 %v314
    %v316 = vlaneseq
    %v317 = vshrl.u32 %v316, 7
    %v318 = vsub.s32 %v315, %v317
    %v319 = vrot.slane %v303, %v318
    %v321 = vunpack.c.l.s4 1966171168
    %v322 = vunpack.c.0.s8 %v321
    %v323 = vlaneseq
    %v324 = vshrl.u32 %v323, 7
    %v325 = vsub.s32 %v322, %v324
    %v326 = vrot.slane %v304, %v325
    %v328 = vunpack.c.l.s4 1966171168
    %v329 = vunpack.c.0.s8 %v328
    %v330 = vlaneseq
    %v331 = vshrl.u32 %v330, 7
    %v332 = vsub.s32 %v329, %v331
    %v333 = vrot.slane %v305, %v332
    %v334 = vcombine.high %v312, %v312
    %v335 = vcombine.high %v326, %v326
    %v534 = vunpack.c.l.b16 %v74
    %v535 = vunpack.c.h.b16 %v74
    %v536 = vunpack.c.l.b16 %v75
    %v537 = vunpack.c.h.b16 %v75
    %v538 = vunpack.c.l.b16 %v76
    %v539 = vunpack.c.h.b16 %v76
    %v540 = vunpack.c.l.b16 %v77
    %v541 = vunpack.c.h.b16 %v77
    %v542 = vunpack.c.l.b16 %v78
    %v543 = vunpack.c.h.b16 %v78
    %v544 = vunpack.c.l.b16 %v79
    %v545 = vunpack.c.h.b16 %v79
    %v546 = vunpack.c.l.b16 %v80
    %v547 = vunpack.c.h.b16 %v80
    %v548 = vunpack.c.l.b16 %v81
    %v549 = vunpack.c.h.b16 %v81
    %v550 = vunpack.c.l.b16 %v82
    %v551 = vunpack.c.h.b16 %v82
    %v552 = vunpack.c.l.b16 %v83
    %v553 = vunpack.c.h.b16 %v83
    %v554 = vunpack.c.l.b16 %v84
    %v555 = vunpack.c.h.b16 %v84
    %v556 = vunpack.c.l.b16 %v85
    %v557 = vunpack.c.h.b16 %v85
    %v558 = vunpack.c.l.b16 %v86
    %v559 = vunpack.c.h.b16 %v86
    %v560 = vunpack.c.l.b16 %v87
    %v561 = vunpack.c.h.b16 %v87
    %v562 = vunpack.c.l.b16 %v88
    %v563 = vunpack.c.h.b16 %v88
    %v564 = vunpack.c.l.b16 %v89
    %v565 = vunpack.c.h.b16 %v89
    %v566 = vunpack.c.l.b16 %v90
    %v567 = vunpack.c.h.b16 %v90
    %v568 = vunpack.c.l.b16 %v91
    %v569 = vunpack.c.h.b16 %v91
    %v570 = vunpack.c.l.b16 %v92
    %v571 = vunpack.c.h.b16 %v92
    %v572 = vunpack.c.l.b16 %v93
    %v573 = vunpack.c.h.b16 %v93
    %v574 = vunpack.c.l.b16 %v94
    %v575 = vunpack.c.h.b16 %v94
    %v576 = vunpack.c.l.b16 %v95
    %v577 = vunpack.c.h.b16 %v95
    %v578 = vunpack.c.l.b16 %v96
    %v579 = vunpack.c.h.b16 %v96
    %v580 = vunpack.c.l.b16 %v97
    %v581 = vunpack.c.h.b16 %v97
    %v582 = vunpack.c.l.b16 %v98
    %v583 = vunpack.c.h.b16 %v98
    %v584 = vunpack.c.l.b16 %v99
    %v585 = vunpack.c.h.b16 %v99
    %v586 = vunpack.c.l.b16 %v100
    %v587 = vunpack.c.h.b16 %v100
    %v588 = vunpack.c.l.b16 %v101
    %v589 = vunpack.c.h.b16 %v101
    %v590 = vunpack.c.l.b16 %v102
    %v591 = vunpack.c.h.b16 %v102
    %v592 = vunpack.c.l.b16 %v103
    %v593 = vunpack.c.h.b16 %v103
    %v594 = vunpack.c.l.b16 %v104
    %v595 = vunpack.c.h.b16 %v104
    %v596 = vunpack.c.l.b16 %v105
    %v597 = vunpack.c.h.b16 %v105
    %v598 = vunpack.c.l.b16 %v106
    %v599 = vunpack.c.h.b16 %v106
    %v600 = vunpack.c.l.b16 %v107
    %v601 = vunpack.c.h.b16 %v107
    %v602 = vunpack.c.l.b16 %v108
    %v603 = vunpack.c.h.b16 %v108
    %v604 = vunpack.c.l.b16 %v109
    %v605 = vunpack.c.h.b16 %v109
    %v606 = vunpack.c.l.b16 %v110
    %v607 = vunpack.c.h.b16 %v110
    %v608 = vunpack.c.l.b16 %v111
    %v609 = vunpack.c.h.b16 %v111
    %v610 = vunpack.c.l.b16 %v112
    %v611 = vunpack.c.h.b16 %v112
    %v612 = vunpack.c.l.b16 %v113
    %v613 = vunpack.c.h.b16 %v113
    %v614 = vunpack.c.l.b16 %v114
    %v615 = vunpack.c.h.b16 %v114
    %v616 = vunpack.c.l.b16 %v115
    %v617 = vunpack.c.h.b16 %v115
    %v618 = vunpack.c.l.b16 %v116
    %v619 = vunpack.c.h.b16 %v116
    %v620 = vunpack.c.l.b16 %v117
    %v621 = vunpack.c.h.b16 %v117
    %v622 = vunpack.c.l.b16 %v118
    %v623 = vunpack.c.h.b16 %v118
    %v624 = vunpack.c.l.b16 %v119
    %v625 = vunpack.c.h.b16 %v119
    %v626 = vunpack.c.l.b16 %v120
    %v627 = vunpack.c.h.b16 %v120
    %v628 = vunpack.c.l.b16 %v121
    %v629 = vunpack.c.h.b16 %v121
    %v630 = vunpack.c.l.b16 %v122
    %v631 = vunpack.c.h.b16 %v122
    %v632 = vunpack.c.l.b16 %v123
    %v633 = vunpack.c.h.b16 %v123
    %v634 = vunpack.c.l.b16 %v124
    %v635 = vunpack.c.h.b16 %v124
    %v636 = vunpack.c.l.b16 %v125
    %v637 = vunpack.c.h.b16 %v125
    %v638 = vunpack.c.l.b16 %v126
    %v639 = vunpack.c.h.b16 %v126
    %v640 = vunpack.c.l.b16 %v127
    %v641 = vunpack.c.h.b16 %v127
    %v642 = vunpack.c.l.b16 %v128
    %v643 = vunpack.c.h.b16 %v128
    %v644 = vunpack.c.l.b16 %v129
    %v645 = vunpack.c.h.b16 %v129
    %v646 = vunpack.c.l.b16 %v130
    %v647 = vunpack.c.h.b16 %v130
    %v648 = vunpack.c.l.b16 %v131
    %v649 = vunpack.c.h.b16 %v131
    %v650 = vunpack.c.l.b16 %v132
    %v651 = vunpack.c.h.b16 %v132
    %v652 = vunpack.c.l.b16 %v133
    %v653 = vunpack.c.h.b16 %v133
    %v654 = vunpack.c.l.b16 %v134
    %v655 = vunpack.c.h.b16 %v134
    %v656 = vunpack.c.l.b16 %v135
    %v657 = vunpack.c.h.b16 %v135
    %v658 = vunpack.c.l.b16 %v136
    %v659 = vunpack.c.h.b16 %v136
    %v660 = vunpack.c.l.b16 %v137
    %v661 = vunpack.c.h.b16 %v137
    %v662 = vunpack.c.l.b16 %v138
    %v663 = vunpack.c.h.b16 %v138
    %v664 = vunpack.c.l.b16 %v139
    %v665 = vunpack.c.h.b16 %v139
    %v666 = vunpack.c.l.b16 %v140
    %v667 = vunpack.c.h.b16 %v140
    %v668 = vunpack.c.l.b16 %v141
    %v669 = vunpack.c.h.b16 %v141
    %v670 = vunpack.c.l.b16 %v142
    %v671 = vunpack.c.h.b16 %v142
    %v672 = vunpack.c.l.b16 %v143
    %v673 = vunpack.c.h.b16 %v143
    %v674 = vunpack.c.l.b16 %v144
    %v675 = vunpack.c.h.b16 %v144
    %v676 = vunpack.c.l.b16 %v145
    %v677 = vunpack.c.h.b16 %v145
    %v678 = vunpack.c.l.b16 %v146
    %v679 = vunpack.c.h.b16 %v146
    %v680 = vunpack.c.l.b16 %v147
    %v681 = vunpack.c.h.b16 %v147
    %v682 = vunpack.c.l.b16 %v148
    %v683 = vunpack.c.h.b16 %v148
    %v684 = vunpack.c.l.b16 %v149
    %v685 = vunpack.c.h.b16 %v149
    %v686 = vunpack.c.l.b16 %v150
    %v687 = vunpack.c.h.b16 %v150
    %v688 = vunpack.c.l.b16 %v151
    %v689 = vunpack.c.h.b16 %v151
    %v690 = vunpack.c.l.b16 %v152
    %v691 = vunpack.c.h.b16 %v152
    %v692 = vunpack.c.l.b16 %v153
    %v693 = vunpack.c.h.b16 %v153
    %v694 = vunpack.c.l.b16 %v154
    %v695 = vunpack.c.h.b16 %v154
    %v696 = vunpack.c.l.b16 %v155
    %v697 = vunpack.c.h.b16 %v155
    %v698 = vunpack.c.l.b16 %v156
    %v699 = vunpack.c.h.b16 %v156
    %v700 = vunpack.c.l.b16 %v157
    %v701 = vunpack.c.h.b16 %v157
    %v702 = vunpack.c.l.b16 %v158
    %v703 = vunpack.c.h.b16 %v158
    %v704 = vunpack.c.l.b16 %v159
    %v705 = vunpack.c.h.b16 %v159
    %v706 = vunpack.c.l.b16 %v160
    %v707 = vunpack.c.h.b16 %v160
    %v708 = vunpack.c.l.b16 %v161
    %v709 = vunpack.c.h.b16 %v161
    %v710 = vunpack.c.l.b16 %v162
    %v711 = vunpack.c.h.b16 %v162
    %v712 = vunpack.c.l.b16 %v163
    %v713 = vunpack.c.h.b16 %v163
    %v714 = vunpack.c.l.b16 %v164
    %v715 = vunpack.c.h.b16 %v164
    %v716 = vunpack.c.l.b16 %v165
    %v717 = vunpack.c.h.b16 %v165
    %v718 = vunpack.c.l.b16 %v166
    %v719 = vunpack.c.h.b16 %v166
    %v720 = vunpack.c.l.b16 %v167
    %v721 = vunpack.c.h.b16 %v167
    %v722 = vunpack.c.l.b16 %v168
    %v723 = vunpack.c.h.b16 %v168
    %v724 = vunpack.c.l.b16 %v169
    %v725 = vunpack.c.h.b16 %v169
    %v726 = vunpack.c.l.b16 %v170
    %v727 = vunpack.c.h.b16 %v170
    %v728 = vunpack.c.l.b16 %v171
    %v729 = vunpack.c.h.b16 %v171
    %v730 = vunpack.c.l.b16 %v172
    %v731 = vunpack.c.h.b16 %v172
    %v732 = vunpack.c.l.b16 %v173
    %v733 = vunpack.c.h.b16 %v173
    %v734 = vunpack.c.l.b16 %v174
    %v735 = vunpack.c.h.b16 %v174
    %v736 = vunpack.c.l.b16 %v175
    %v737 = vunpack.c.h.b16 %v175
    %v738 = vunpack.c.l.b16 %v176
    %v739 = vunpack.c.h.b16 %v176
    %v740 = vunpack.c.l.b16 %v177
    %v741 = vunpack.c.h.b16 %v177
    %v742 = vunpack.c.l.b16 %v178
    %v743 = vunpack.c.h.b16 %v178
    %v744 = vunpack.c.l.b16 %v179
    %v745 = vunpack.c.h.b16 %v179
    %v746 = vunpack.c.l.b16 %v180
    %v747 = vunpack.c.h.b16 %v180
    %v748 = vunpack.c.l.b16 %v181
    %v749 = vunpack.c.h.b16 %v181
    %v750 = vunpack.c.l.b16 %v182
    %v751 = vunpack.c.h.b16 %v182
    %v752 = vunpack.c.l.b16 %v183
    %v753 = vunpack.c.h.b16 %v183
    %v754 = vunpack.c.l.b16 %v184
    %v755 = vunpack.c.h.b16 %v184
    %v756 = vunpack.c.l.b16 %v185
    %v757 = vunpack.c.h.b16 %v185
    %v758 = vunpack.c.l.b16 %v186
    %v759 = vunpack.c.h.b16 %v186
    %v760 = vunpack.c.l.b16 %v187
    %v761 = vunpack.c.h.b16 %v187
    %v762 = vunpack.c.l.b16 %v188
    %v763 = vunpack.c.h.b16 %v188
    %v764 = vunpack.c.l.b16 %v189
    %v765 = vunpack.c.h.b16 %v189
    %v766 = vunpack.c.l.b16 %v190
    %v767 = vunpack.c.h.b16 %v190
    %v768 = vunpack.c.l.b16 %v191
    %v769 = vunpack.c.h.b16 %v191
    %v770 = vunpack.c.l.b16 %v192
    %v771 = vunpack.c.h.b16 %v192
    %v772 = vunpack.c.l.b16 %v193
    %v773 = vunpack.c.h.b16 %v193
    %v774 = vunpack.c.l.b16 %v194
    %v775 = vunpack.c.h.b16 %v194
    %v776 = vunpack.c.l.b16 %v195
    %v777 = vunpack.c.h.b16 %v195
    %v778 = vunpack.c.l.b16 %v196
    %v779 = vunpack.c.h.b16 %v196
    %v780 = vunpack.c.l.b16 %v197
    %v781 = vunpack.c.h.b16 %v197
    %v782 = vunpack.c.l.b16 %v198
    %v783 = vunpack.c.h.b16 %v198
    %v784 = vunpack.c.l.b16 %v199
    %v785 = vunpack.c.h.b16 %v199
    %v786 = vunpack.c.l.b16 %v200
    %v787 = vunpack.c.h.b16 %v200
    %v788 = vunpack.c.l.b16 %v201
    %v789 = vunpack.c.h.b16 %v201
    %v790 = vunpack.c.l.b16 %v202
    %v791 = vunpack.c.h.b16 %v202
    %v792 = vunpack.c.l.b16 %v203
    %v793 = vunpack.c.h.b16 %v203
    %v794 = vunpack.c.l.b16 %v204
    %v795 = vunpack.c.h.b16 %v204
    %v796 = vunpack.c.l.b16 %v205
    %v797 = vunpack.c.h.b16 %v205
    %v798 = vunpack.c.l.b16 %v206
    %v799 = vunpack.c.h.b16 %v206
    %v800 = vunpack.c.l.b16 %v207
    %v801 = vunpack.c.h.b16 %v207
    %v802 = vunpack.c.l.b16 %v208
    %v803 = vunpack.c.h.b16 %v208
    %v804 = vunpack.c.l.b16 %v209
    %v805 = vunpack.c.h.b16 %v209
    %v806 = vunpack.c.l.b16 %v210
    %v807 = vunpack.c.h.b16 %v210
    %v808 = vunpack.c.l.b16 %v211
    %v809 = vunpack.c.h.b16 %v211
    %v810 = vunpack.c.l.b16 %v212
    %v811 = vunpack.c.h.b16 %v212
    %v812 = vunpack.c.l.b16 %v213
    %v813 = vunpack.c.h.b16 %v213
    %v814 = vunpack.c.l.b16 %v214
    %v815 = vunpack.c.h.b16 %v214
    %v816 = vunpack.c.l.b16 %v215
    %v817 = vunpack.c.h.b16 %v215
    %v818 = vunpack.c.l.b16 %v216
    %v819 = vunpack.c.h.b16 %v216
    %v820 = vunpack.c.l.b16 %v217
    %v821 = vunpack.c.h.b16 %v217
    %v822 = vunpack.c.l.b16 %v218
    %v823 = vunpack.c.h.b16 %v218
    %v824 = vunpack.c.l.b16 %v219
    %v825 = vunpack.c.h.b16 %v219
    %v826 = vunpack.c.l.b16 %v220
    %v827 = vunpack.c.h.b16 %v220
    %v828 = vunpack.c.l.b16 %v221
    %v829 = vunpack.c.h.b16 %v221
    %v830 = vunpack.c.l.b16 %v222
    %v831 = vunpack.c.h.b16 %v222
    %v832 = vunpack.c.l.b16 %v223
    %v833 = vunpack.c.h.b16 %v223
    %v834 = vunpack.c.l.b16 %v224
    %v835 = vunpack.c.h.b16 %v224
    %v836 = vunpack.c.l.b16 %v225
    %v837 = vunpack.c.h.b16 %v225
    %v838 = vunpack.c.l.b16 %v226
    %v839 = vunpack.c.h.b16 %v226
    %v840 = vunpack.c.l.b16 %v227
    %v841 = vunpack.c.h.b16 %v227
    %v842 = vunpack.c.l.b16 %v228
    %v843 = vunpack.c.h.b16 %v228
    %v844 = vunpack.c.l.b16 %v229
    %v845 = vunpack.c.h.b16 %v229
    %v846 = vunpack.c.l.b16 %v230
    %v847 = vunpack.c.h.b16 %v230
    %v848 = vunpack.c.l.b16 %v231
    %v849 = vunpack.c.h.b16 %v231
    %v850 = vunpack.c.l.b16 %v232
    %v851 = vunpack.c.h.b16 %v232
    %v852 = vunpack.c.l.b16 %v233
    %v853 = vunpack.c.h.b16 %v233
    %v854 = vunpack.c.l.b16 %v234
    %v855 = vunpack.c.h.b16 %v234
    %v856 = vunpack.c.l.b16 %v235
    %v857 = vunpack.c.h.b16 %v235
    %v858 = vunpack.c.l.b16 %v236
    %v859 = vunpack.c.h.b16 %v236
    %v860 = vunpack.c.l.b16 %v237
    %v861 = vunpack.c.h.b16 %v237
    %v862 = vunpack.c.l.b16 %v238
    %v863 = vunpack.c.h.b16 %v238
    %v864 = vunpack.c.l.b16 %v239
    %v865 = vunpack.c.h.b16 %v239
    %v866 = vunpack.c.l.b16 %v240
    %v867 = vunpack.c.h.b16 %v240
    %v868 = vunpack.c.l.b16 %v241
    %v869 = vunpack.c.h.b16 %v241
    %v870 = vunpack.c.l.b16 %v242
    %v871 = vunpack.c.h.b16 %v242
    %v872 = vunpack.c.l.b16 %v243
    %v873 = vunpack.c.h.b16 %v243
    %v874 = vunpack.c.l.b16 %v244
    %v875 = vunpack.c.h.b16 %v244
    %v876 = vunpack.c.l.b16 %v245
    %v877 = vunpack.c.h.b16 %v245
    %v878 = vunpack.c.l.b16 %v246
    %v879 = vunpack.c.h.b16 %v246
    %v880 = vunpack.c.l.b16 %v247
    %v881 = vunpack.c.h.b16 %v247
    %v882 = vunpack.c.l.b16 %v248
    %v883 = vunpack.c.h.b16 %v248
    %v884 = vunpack.c.l.b16 %v249
    %v885 = vunpack.c.h.b16 %v249
    %v886 = vunpack.c.l.b16 %v250
    %v887 = vunpack.c.h.b16 %v250
    %v888 = vunpack.c.l.b16 %v251
    %v889 = vunpack.c.h.b16 %v251
    %v890 = vunpack.c.l.b16 %v252
    %v891 = vunpack.c.h.b16 %v252
    %v892 = vunpack.c.l.b16 %v253
    %v893 = vunpack.c.h.b16 %v253
    %v894 = vunpack.c.l.b16 %v254
    %v895 = vunpack.c.h.b16 %v254
    %v896 = vunpack.c.l.b16 %v255
    %v897 = vunpack.c.h.b16 %v255
    %v898 = vunpack.c.l.b16 %v256
    %v899 = vunpack.c.h.b16 %v256
    %v900 = vunpack.c.l.b16 %v257
    %v901 = vunpack.c.h.b16 %v257
    %v902 = vunpack.c.l.b16 %v258
    %v903 = vunpack.c.h.b16 %v258
    %v904 = vunpack.c.l.b16 %v259
    %v905 = vunpack.c.h.b16 %v259
    %v906 = vunpack.c.l.b16 %v260
    %v907 = vunpack.c.h.b16 %v260
    %v908 = vunpack.c.l.b16 %v261
    %v909 = vunpack.c.h.b16 %v261
    %v910 = vunpack.c.l.b16 %v262
    %v911 = vunpack.c.h.b16 %v262
    %v912 = vunpack.c.l.b16 %v263
    %v913 = vunpack.c.h.b16 %v263
    %v914 = vunpack.c.l.b16 %v264
    %v915 = vunpack.c.h.b16 %v264
    %v916 = vunpack.c.l.b16 %v265
    %v917 = vunpack.c.h.b16 %v265
    %v918 = vpack.c.b16 %v538, %v534
    %v919 = vpack.c.b16 %v539, %v535
    %v920 = vpack.c.b16 %v540, %v536
    %v921 = vpack.c.b16 %v541, %v537
    %v922 = vpack.c.b16 %v546, %v542
    %v923 = vpack.c.b16 %v547, %v543
    %v924 = vpack.c.b16 %v548, %v544
    %v925 = vpack.c.b16 %v549, %v545
    %v926 = vpack.c.b16 %v554, %v550
    %v927 = vpack.c.b16 %v555, %v551
    %v928 = vpack.c.b16 %v556, %v552
    %v929 = vpack.c.b16 %v557, %v553
    %v930 = vpack.c.b16 %v562, %v558
    %v931 = vpack.c.b16 %v563, %v559
    %v932 = vpack.c.b16 %v564, %v560
    %v933 = vpack.c.b16 %v565, %v561
    %v934 = vpack.c.b16 %v570, %v566
    %v935 = vpack.c.b16 %v571, %v567
    %v936 = vpack.c.b16 %v572, %v568
    %v937 = vpack.c.b16 %v573, %v569
    %v938 = vpack.c.b16 %v578, %v574
    %v939 = vpack.c.b16 %v579, %v575
    %v940 = vpack.c.b16 %v580, %v576
    %v941 = vpack.c.b16 %v581, %v577
    %v942 = vpack.c.b16 %v586, %v582
    %v943 = vpack.c.b16 %v587, %v583
    %v944 = vpack.c.b16 %v588, %v584
    %v945 = vpack.c.b16 %v589, %v585
    %v946 = vpack.c.b16 %v594, %v590
    %v947 = vpack.c.b16 %v595, %v591
    %v948 = vpack.c.b16 %v596, %v592
    %v949 = vpack.c.b16 %v597, %v593
    %v950 = vpack.c.b16 %v602, %v598
    %v951 = vpack.c.b16 %v603, %v599
    %v952 = vpack.c.b16 %v604, %v600
    %v953 = vpack.c.b16 %v605, %v601
    %v954 = vpack.c.b16 %v610, %v606
    %v955 = vpack.c.b16 %v611, %v607
    %v956 = vpack.c.b16 %v612, %v608
    %v957 = vpack.c.b16 %v613, %v609
    %v958 = vpack.c.b16 %v618, %v614
    %v959 = vpack.c.b16 %v619, %v615
    %v960 = vpack.c.b16 %v620, %v616
    %v961 = vpack.c.b16 %v621, %v617
    %v962 = vpack.c.b16 %v626, %v622
    %v963 = vpack.c.b16 %v627, %v623
    %v964 = vpack.c.b16 %v628, %v624
    %v965 = vpack.c.b16 %v629, %v625
    %v966 = vpack.c.b16 %v634, %v630
    %v967 = vpack.c.b16 %v635, %v631
    %v968 = vpack.c.b16 %v636, %v632
    %v969 = vpack.c.b16 %v637, %v633
    %v970 = vpack.c.b16 %v642, %v638
    %v971 = vpack.c.b16 %v643, %v639
    %v972 = vpack.c.b16 %v644, %v640
    %v973 = vpack.c.b16 %v645, %v641
    %v974 = vpack.c.b16 %v650, %v646
    %v975 = vpack.c.b16 %v651, %v647
    %v976 = vpack.c.b16 %v652, %v648
    %v977 = vpack.c.b16 %v653, %v649
    %v978 = vpack.c.b16 %v658, %v654
    %v979 = vpack.c.b16 %v659, %v655
    %v980 = vpack.c.b16 %v660, %v656
    %v981 = vpack.c.b16 %v661, %v657
    %v982 = vpack.c.b16 %v666, %v662
    %v983 = vpack.c.b16 %v667, %v663
    %v984 = vpack.c.b16 %v668, %v664
    %v985 = vpack.c.b16 %v669, %v665
    %v986 = vpack.c.b16 %v674, %v670
    %v987 = vpack.c.b16 %v675, %v671
    %v988 = vpack.c.b16 %v676, %v672
    %v989 = vpack.c.b16 %v677, %v673
    %v990 = vpack.c.b16 %v682, %v678
    %v991 = vpack.c.b16 %v683, %v679
    %v992 = vpack.c.b16 %v684, %v680
    %v993 = vpack.c.b16 %v685, %v681
    %v994 = vpack.c.b16 %v690, %v686
    %v995 = vpack.c.b16 %v691, %v687
    %v996 = vpack.c.b16 %v692, %v688
    %v997 = vpack.c.b16 %v693, %v689
    %v998 = vpack.c.b16 %v698, %v694
    %v999 = vpack.c.b16 %v699, %v695
    %v1000 = vpack.c.b16 %v700, %v696
    %v1001 = vpack.c.b16 %v701, %v697
    %v1002 = vpack.c.b16 %v706, %v702
    %v1003 = vpack.c.b16 %v707, %v703
    %v1004 = vpack.c.b16 %v708, %v704
    %v1005 = vpack.c.b16 %v709, %v705
    %v1006 = vpack.c.b16 %v714, %v710
    %v1007 = vpack.c.b16 %v715, %v711
    %v1008 = vpack.c.b16 %v716, %v712
    %v1009 = vpack.c.b16 %v717, %v713
    %v1010 = vpack.c.b16 %v722, %v718
    %v1011 = vpack.c.b16 %v723, %v719
    %v1012 = vpack.c.b16 %v724, %v720
    %v1013 = vpack.c.b16 %v725, %v721
    %v1014 = vpack.c.b16 %v730, %v726
    %v1015 = vpack.c.b16 %v731, %v727
    %v1016 = vpack.c.b16 %v732, %v728
    %v1017 = vpack.c.b16 %v733, %v729
    %v1018 = vpack.c.b16 %v738, %v734
    %v1019 = vpack.c.b16 %v739, %v735
    %v1020 = vpack.c.b16 %v740, %v736
    %v1021 = vpack.c.b16 %v741, %v737
    %v1022 = vpack.c.b16 %v746, %v742
    %v1023 = vpack.c.b16 %v747, %v743
    %v1024 = vpack.c.b16 %v748, %v744
    %v1025 = vpack.c.b16 %v749, %v745
    %v1026 = vpack.c.b16 %v754, %v750
    %v1027 = vpack.c.b16 %v755, %v751
    %v1028 = vpack.c.b16 %v756, %v752
    %v1029 = vpack.c.b16 %v757, %v753
    %v1030 = vpack.c.b16 %v762, %v758
    %v1031 = vpack.c.b16 %v763, %v759
    %v1032 = vpack.c.b16 %v764, %v760
    %v1033 = vpack.c.b16 %v765, %v761
    %v1034 = vpack.c.b16 %v770, %v766
    %v1035 = vpack.c.b16 %v771, %v767
    %v1036 = vpack.c.b16 %v772, %v768
    %v1037 = vpack.c.b16 %v773, %v769
    %v1038 = vpack.c.b16 %v778, %v774
    %v1039 = vpack.c.b16 %v779, %v775
    %v1040 = vpack.c.b16 %v780, %v776
    %v1041 = vpack.c.b16 %v781, %v777
    %v1042 = vpack.c.b16 %v786, %v782
    %v1043 = vpack.c.b16 %v787, %v783
    %v1044 = vpack.c.b16 %v788, %v784
    %v1045 = vpack.c.b16 %v789, %v785
    %v1046 = vpack.c.b16 %v794, %v790
    %v1047 = vpack.c.b16 %v795, %v791
    %v1048 = vpack.c.b16 %v796, %v792
    %v1049 = vpack.c.b16 %v797, %v793
    %v1050 = vpack.c.b16 %v802, %v798
    %v1051 = vpack.c.b16 %v803, %v799
    %v1052 = vpack.c.b16 %v804, %v800
    %v1053 = vpack.c.b16 %v805, %v801
    %v1054 = vpack.c.b16 %v810, %v806
    %v1055 = vpack.c.b16 %v811, %v807
    %v1056 = vpack.c.b16 %v812, %v808
    %v1057 = vpack.c.b16 %v813, %v809
    %v1058 = vpack.c.b16 %v818, %v814
    %v1059 = vpack.c.b16 %v819, %v815
    %v1060 = vpack.c.b16 %v820, %v816
    %v1061 = vpack.c.b16 %v821, %v817
    %v1062 = vpack.c.b16 %v826, %v822
    %v1063 = vpack.c.b16 %v827, %v823
    %v1064 = vpack.c.b16 %v828, %v824
    %v1065 = vpack.c.b16 %v829, %v825
    %v1066 = vpack.c.b16 %v834, %v830
    %v1067 = vpack.c.b16 %v835, %v831
    %v1068 = vpack.c.b16 %v836, %v832
    %v1069 = vpack.c.b16 %v837, %v833
    %v1070 = vpack.c.b16 %v842, %v838
    %v1071 = vpack.c.b16 %v843, %v839
    %v1072 = vpack.c.b16 %v844, %v840
    %v1073 = vpack.c.b16 %v845, %v841
    %v1074 = vpack.c.b16 %v850, %v846
    %v1075 = vpack.c.b16 %v851, %v847
    %v1076 = vpack.c.b16 %v852, %v848
    %v1077 = vpack.c.b16 %v853, %v849
    %v1078 = vpack.c.b16 %v858, %v854
    %v1079 = vpack.c.b16 %v859, %v855
    %v1080 = vpack.c.b16 %v860, %v856
    %v1081 = vpack.c.b16 %v861, %v857
    %v1082 = vpack.c.b16 %v866, %v862
    %v1083 = vpack.c.b16 %v867, %v863
    %v1084 = vpack.c.b16 %v868, %v864
    %v1085 = vpack.c.b16 %v869, %v865
    %v1086 = vpack.c.b16 %v874, %v870
    %v1087 = vpack.c.b16 %v875, %v871
    %v1088 = vpack.c.b16 %v876, %v872
    %v1089 = vpack.c.b16 %v877, %v873
    %v1090 = vpack.c.b16 %v882, %v878
    %v1091 = vpack.c.b16 %v883, %v879
    %v1092 = vpack.c.b16 %v884, %v880
    %v1093 = vpack.c.b16 %v885, %v881
    %v1094 = vpack.c.b16 %v890, %v886
    %v1095 = vpack.c.b16 %v891, %v887
    %v1096 = vpack.c.b16 %v892, %v888
    %v1097 = vpack.c.b16 %v893, %v889
    %v1098 = vpack.c.b16 %v898, %v894
    %v1099 = vpack.c.b16 %v899, %v895
    %v1100 = vpack.c.b16 %v900, %v896
    %v1101 = vpack.c.b16 %v901, %v897
    %v1102 = vpack.c.b16 %v906, %v902
    %v1103 = vpack.c.b16 %v907, %v903
    %v1104 = vpack.c.b16 %v908, %v904
    %v1105 = vpack.c.b16 %v909, %v905
    %v1106 = vpack.c.b16 %v914, %v910
    %v1107 = vpack.c.b16 %v915, %v911
    %v1108 = vpack.c.b16 %v916, %v912
    %v1109 = vpack.c.b16 %v917, %v913
    %1302 = vmatprep.subr.bf16.mxu0 %v947
    %1303 = vmatpush1.bf16.msra.mxu0 %v946
    %1304 = vmatprep.subr.bf16.mxu0 %v943
    %1305 = vmatpush1.bf16.msra.mxu0 %v942
    %1306 = vmatprep.subr.bf16.mxu0 %v939
    %1307 = vmatpush1.bf16.msra.mxu0 %v938
    %1308 = vmatprep.subr.bf16.mxu0 %v935
    %1309 = vmatpush1.bf16.msra.mxu0 %v934
    %1310 = vmatprep.subr.bf16.mxu0 %v931
    %1311 = vmatpush1.bf16.msra.mxu0 %v930
    %1312 = vmatprep.subr.bf16.mxu0 %v927
    %1313 = vmatpush1.bf16.msra.mxu0 %v926
    %1314 = vmatprep.subr.bf16.mxu0 %v923
    %1315 = vmatpush1.bf16.msra.mxu0 %v922
    %1316 = vmatprep.subr.bf16.mxu0 %v919
    %1317 = vmatpush1.bf16.msra.mxu0 %v918
    %1318 = vmatprep.subr.bf16.mxu0 %v979
    %1319 = vmatpush2.bf16.msra.mxu0 %v978
    %1320 = vmatprep.subr.bf16.mxu0 %v975
    %1321 = vmatpush2.bf16.msra.mxu0 %v974
    %1322 = vmatprep.subr.bf16.mxu0 %v971
    %1323 = vmatpush2.bf16.msra.mxu0 %v970
    %1324 = vmatprep.subr.bf16.mxu0 %v967
    %1325 = vmatpush2.bf16.msra.mxu0 %v966
    %1326 = vmatprep.subr.bf16.mxu0 %v963
    %1327 = vmatpush2.bf16.msra.mxu0 %v962
    %1328 = vmatprep.subr.bf16.mxu0 %v959
    %1329 = vmatpush2.bf16.msra.mxu0 %v958
    %1330 = vmatprep.subr.bf16.mxu0 %v955
    %1331 = vmatpush2.bf16.msra.mxu0 %v954
    %1332 = vmatprep.subr.bf16.mxu0 %v951
    %1333 = vmatpush2.bf16.msra.mxu0 %v950
    %1334 = vmatprep.mubr.bf16.mxu0 %v326
    %1335 = vmatmul.mubr.bf16.gmra.mxu0 %v312
    %v1336 = vpop.f32.mrf.mxu0
    %v1337 = vadd.f32 %v271, %v1336
    %v1338 = vpop.f32.mrf.mxu0
    %v1339 = vadd.f32 %v275, %v1338
    %v1340 = vpop.f32.mrf.mxu0
    %v1341 = vpop.f32.mrf.mxu0
    %1342 = vdwg.mxu0
    %1343 = vmatprep.subr.bf16.mxu0 %v1011
    %1344 = vmatpush1.bf16.msra.mxu0 %v1010
    %1345 = vmatprep.subr.bf16.mxu0 %v1007
    %1346 = vmatpush1.bf16.msra.mxu0 %v1006
    %1347 = vmatprep.subr.bf16.mxu0 %v1003
    %1348 = vmatpush1.bf16.msra.mxu0 %v1002
    %1349 = vmatprep.subr.bf16.mxu0 %v999
    %1350 = vmatpush1.bf16.msra.mxu0 %v998
    %1351 = vmatprep.subr.bf16.mxu0 %v995
    %1352 = vmatpush1.bf16.msra.mxu0 %v994
    %1353 = vmatprep.subr.bf16.mxu0 %v991
    %1354 = vmatpush1.bf16.msra.mxu0 %v990
    %1355 = vmatprep.subr.bf16.mxu0 %v987
    %1356 = vmatpush1.bf16.msra.mxu0 %v986
    %1357 = vmatprep.subr.bf16.mxu0 %v983
    %1358 = vmatpush1.bf16.msra.mxu0 %v982
    %1359 = vmatprep.subr.bf16.mxu0 %v1043
    %1360 = vmatpush2.bf16.msra.mxu0 %v1042
    %1361 = vmatprep.subr.bf16.mxu0 %v1039
    %1362 = vmatpush2.bf16.msra.mxu0 %v1038
    %1363 = vmatprep.subr.bf16.mxu0 %v1035
    %1364 = vmatpush2.bf16.msra.mxu0 %v1034
    %1365 = vmatprep.subr.bf16.mxu0 %v1031
    %1366 = vmatpush2.bf16.msra.mxu0 %v1030
    %1367 = vmatprep.subr.bf16.mxu0 %v1027
    %1368 = vmatpush2.bf16.msra.mxu0 %v1026
    %1369 = vmatprep.subr.bf16.mxu0 %v1023
    %1370 = vmatpush2.bf16.msra.mxu0 %v1022
    %1371 = vmatprep.subr.bf16.mxu0 %v1019
    %1372 = vmatpush2.bf16.msra.mxu0 %v1018
    %1373 = vmatprep.subr.bf16.mxu0 %v1015
    %1374 = vmatpush2.bf16.msra.mxu0 %v1014
    %1375 = vmatprep.mubr.bf16.mxu0 %v335
    %1376 = vmatmul.mubr.bf16.gmra.mxu0 %v334
    %v1377 = vpop.f32.mrf.mxu0
    %v1378 = vadd.f32 %v1337, %v1377
    %v1379 = vpop.f32.mrf.mxu0
    %v1380 = vadd.f32 %v1339, %v1379
    %v1381 = vpop.f32.mrf.mxu0
    %v1382 = vpop.f32.mrf.mxu0
    %1383 = vdwg.mxu0
    %1384 = vmatprep.subr.bf16.mxu0 %v1075
    %1385 = vmatpush1.bf16.msra.mxu0 %v1074
    %1386 = vmatprep.subr.bf16.mxu0 %v1071
    %1387 = vmatpush1.bf16.msra.mxu0 %v1070
    %1388 = vmatprep.subr.bf16.mxu0 %v1067
    %1389 = vmatpush1.bf16.msra.mxu0 %v1066
    %1390 = vmatprep.subr.bf16.mxu0 %v1063
    %1391 = vmatpush1.bf16.msra.mxu0 %v1062
    %1392 = vmatprep.subr.bf16.mxu0 %v1059
    %1393 = vmatpush1.bf16.msra.mxu0 %v1058
    %1394 = vmatprep.subr.bf16.mxu0 %v1055
    %1395 = vmatpush1.bf16.msra.mxu0 %v1054
    %1396 = vmatprep.subr.bf16.mxu0 %v1051
    %1397 = vmatpush1.bf16.msra.mxu0 %v1050
    %1398 = vmatprep.subr.bf16.mxu0 %v1047
    %1399 = vmatpush1.bf16.msra.mxu0 %v1046
    %1400 = vmatprep.subr.bf16.mxu0 %v1107
    %1401 = vmatpush2.bf16.msra.mxu0 %v1106
    %1402 = vmatprep.subr.bf16.mxu0 %v1103
    %1403 = vmatpush2.bf16.msra.mxu0 %v1102
    %1404 = vmatprep.subr.bf16.mxu0 %v1099
    %1405 = vmatpush2.bf16.msra.mxu0 %v1098
    %1406 = vmatprep.subr.bf16.mxu0 %v1095
    %1407 = vmatpush2.bf16.msra.mxu0 %v1094
    %1408 = vmatprep.subr.bf16.mxu0 %v1091
    %1409 = vmatpush2.bf16.msra.mxu0 %v1090
    %1410 = vmatprep.subr.bf16.mxu0 %v1087
    %1411 = vmatpush2.bf16.msra.mxu0 %v1086
    %1412 = vmatprep.subr.bf16.mxu0 %v1083
    %1413 = vmatpush2.bf16.msra.mxu0 %v1082
    %1414 = vmatprep.subr.bf16.mxu0 %v1079
    %1415 = vmatpush2.bf16.msra.mxu0 %v1078
    %1416 = vmatprep.mubr.bf16.mxu0 %v333
    %1417 = vmatmul.mubr.bf16.gmra.mxu0 %v319
    %v1418 = vpop.f32.mrf.mxu0
    %v1419 = vadd.f32 %v1378, %v1418
    %v1420 = vpop.f32.mrf.mxu0
    %v1421 = vadd.f32 %v1380, %v1420
    %v1422 = vpop.f32.mrf.mxu0
    %v1423 = vpop.f32.mrf.mxu0
    %1424 = vdwg.mxu0
    %1425 = vmatprep.subr.bf16.mxu0 %v949
    %1426 = vmatpush1.bf16.msra.mxu0 %v948
    %1427 = vmatprep.subr.bf16.mxu0 %v945
    %1428 = vmatpush1.bf16.msra.mxu0 %v944
    %1429 = vmatprep.subr.bf16.mxu0 %v941
    %1430 = vmatpush1.bf16.msra.mxu0 %v940
    %1431 = vmatprep.subr.bf16.mxu0 %v937
    %1432 = vmatpush1.bf16.msra.mxu0 %v936
    %1433 = vmatprep.subr.bf16.mxu0 %v933
    %1434 = vmatpush1.bf16.msra.mxu0 %v932
    %1435 = vmatprep.subr.bf16.mxu0 %v929
    %1436 = vmatpush1.bf16.msra.mxu0 %v928
    %1437 = vmatprep.subr.bf16.mxu0 %v925
    %1438 = vmatpush1.bf16.msra.mxu0 %v924
    %1439 = vmatprep.subr.bf16.mxu0 %v921
    %1440 = vmatpush1.bf16.msra.mxu0 %v920
    %1441 = vmatprep.subr.bf16.mxu0 %v981
    %1442 = vmatpush2.bf16.msra.mxu0 %v980
    %1443 = vmatprep.subr.bf16.mxu0 %v977
    %1444 = vmatpush2.bf16.msra.mxu0 %v976
    %1445 = vmatprep.subr.bf16.mxu0 %v973
    %1446 = vmatpush2.bf16.msra.mxu0 %v972
    %1447 = vmatprep.subr.bf16.mxu0 %v969
    %1448 = vmatpush2.bf16.msra.mxu0 %v968
    %1449 = vmatprep.subr.bf16.mxu0 %v965
    %1450 = vmatpush2.bf16.msra.mxu0 %v964
    %1451 = vmatprep.subr.bf16.mxu0 %v961
    %1452 = vmatpush2.bf16.msra.mxu0 %v960
    %1453 = vmatprep.subr.bf16.mxu0 %v957
    %1454 = vmatpush2.bf16.msra.mxu0 %v956
    %1455 = vmatprep.subr.bf16.mxu0 %v953
    %1456 = vmatpush2.bf16.msra.mxu0 %v952
    %1457 = vmatprep.mubr.bf16.mxu0 %v326
    %1458 = vmatmul.mubr.bf16.gmra.mxu0 %v312
    %v1459 = vpop.f32.mrf.mxu0
    %v1460 = vadd.f32 %v279, %v1459
    %v1461 = vpop.f32.mrf.mxu0
    %v1462 = vadd.f32 %v283, %v1461
    %v1463 = vpop.f32.mrf.mxu0
    %v1464 = vpop.f32.mrf.mxu0
    %1465 = vdwg.mxu0
    %1466 = vmatprep.subr.bf16.mxu0 %v1013
    %1467 = vmatpush1.bf16.msra.mxu0 %v1012
    %1468 = vmatprep.subr.bf16.mxu0 %v1009
    %1469 = vmatpush1.bf16.msra.mxu0 %v1008
    %1470 = vmatprep.subr.bf16.mxu0 %v1005
    %1471 = vmatpush1.bf16.msra.mxu0 %v1004
    %1472 = vmatprep.subr.bf16.mxu0 %v1001
    %1473 = vmatpush1.bf16.msra.mxu0 %v1000
    %1474 = vmatprep.subr.bf16.mxu0 %v997
    %1475 = vmatpush1.bf16.msra.mxu0 %v996
    %1476 = vmatprep.subr.bf16.mxu0 %v993
    %1477 = vmatpush1.bf16.msra.mxu0 %v992
    %1478 = vmatprep.subr.bf16.mxu0 %v989
    %1479 = vmatpush1.bf16.msra.mxu0 %v988
    %1480 = vmatprep.subr.bf16.mxu0 %v985
    %1481 = vmatpush1.bf16.msra.mxu0 %v984
    %1482 = vmatprep.subr.bf16.mxu0 %v1045
    %1483 = vmatpush2.bf16.msra.mxu0 %v1044
    %1484 = vmatprep.subr.bf16.mxu0 %v1041
    %1485 = vmatpush2.bf16.msra.mxu0 %v1040
    %1486 = vmatprep.subr.bf16.mxu0 %v1037
    %1487 = vmatpush2.bf16.msra.mxu0 %v1036
    %1488 = vmatprep.subr.bf16.mxu0 %v1033
    %1489 = vmatpush2.bf16.msra.mxu0 %v1032
    %1490 = vmatprep.subr.bf16.mxu0 %v1029
    %1491 = vmatpush2.bf16.msra.mxu0 %v1028
    %1492 = vmatprep.subr.bf16.mxu0 %v1025
    %1493 = vmatpush2.bf16.msra.mxu0 %v1024
    %1494 = vmatprep.subr.bf16.mxu0 %v1021
    %1495 = vmatpush2.bf16.msra.mxu0 %v1020
    %1496 = vmatprep.subr.bf16.mxu0 %v1017
    %1497 = vmatpush2.bf16.msra.mxu0 %v1016
    %1498 = vmatprep.mubr.bf16.mxu0 %v335
    %1499 = vmatmul.mubr.bf16.gmra.mxu0 %v334
    %v1500 = vpop.f32.mrf.mxu0
    %v1501 = vadd.f32 %v1460, %v1500
    %v1502 = vpop.f32.mrf.mxu0
    %v1503 = vadd.f32 %v1462, %v1502
    %v1504 = vpop.f32.mrf.mxu0
    %v1505 = vpop.f32.mrf.mxu0
    %1506 = vdwg.mxu0
    %1507 = vmatprep.subr.bf16.mxu0 %v1077
    %1508 = vmatpush1.bf16.msra.mxu0 %v1076
    %1509 = vmatprep.subr.bf16.mxu0 %v1073
    %1510 = vmatpush1.bf16.msra.mxu0 %v1072
    %1511 = vmatprep.subr.bf16.mxu0 %v1069
    %1512 = vmatpush1.bf16.msra.mxu0 %v1068
    %1513 = vmatprep.subr.bf16.mxu0 %v1065
    %1514 = vmatpush1.bf16.msra.mxu0 %v1064
    %1515 = vmatprep.subr.bf16.mxu0 %v1061
    %1516 = vmatpush1.bf16.msra.mxu0 %v1060
    %1517 = vmatprep.subr.bf16.mxu0 %v1057
    %1518 = vmatpush1.bf16.msra.mxu0 %v1056
    %1519 = vmatprep.subr.bf16.mxu0 %v1053
    %1520 = vmatpush1.bf16.msra.mxu0 %v1052
    %1521 = vmatprep.subr.bf16.mxu0 %v1049
    %1522 = vmatpush1.bf16.msra.mxu0 %v1048
    %1523 = vmatprep.subr.bf16.mxu0 %v1109
    %1524 = vmatpush2.bf16.msra.mxu0 %v1108
    %1525 = vmatprep.subr.bf16.mxu0 %v1105
    %1526 = vmatpush2.bf16.msra.mxu0 %v1104
    %1527 = vmatprep.subr.bf16.mxu0 %v1101
    %1528 = vmatpush2.bf16.msra.mxu0 %v1100
    %1529 = vmatprep.subr.bf16.mxu0 %v1097
    %1530 = vmatpush2.bf16.msra.mxu0 %v1096
    %1531 = vmatprep.subr.bf16.mxu0 %v1093
    %1532 = vmatpush2.bf16.msra.mxu0 %v1092
    %1533 = vmatprep.subr.bf16.mxu0 %v1089
    %1534 = vmatpush2.bf16.msra.mxu0 %v1088
    %1535 = vmatprep.subr.bf16.mxu0 %v1085
    %1536 = vmatpush2.bf16.msra.mxu0 %v1084
    %1537 = vmatprep.subr.bf16.mxu0 %v1081
    %1538 = vmatpush2.bf16.msra.mxu0 %v1080
    %1539 = vmatprep.mubr.bf16.mxu0 %v333
    %1540 = vmatmul.mubr.bf16.gmra.mxu0 %v319
    %v1541 = vpop.f32.mrf.mxu0
    %v1542 = vadd.f32 %v1501, %v1541
    %v1543 = vpop.f32.mrf.mxu0
    %v1544 = vadd.f32 %v1503, %v1543
    %v1545 = vpop.f32.mrf.mxu0
    %v1546 = vpop.f32.mrf.mxu0
    %1547 = vdwg.mxu0
    %v1548 = vmax.f32 %v1419, 0.0
    %v1549 = vmax.f32 %v1421, 0.0
    %v1550 = vmax.f32 %v1542, 0.0
    %v1551 = vmax.f32 %v1544, 0.0
    %v1552 = vpack.c.bf16 %v1548, %v1548
    %v1553 = vpack.c.bf16 %v1549, %v1549
    %v1554 = vpack.c.bf16 %v1550, %v1550
    %v1555 = vpack.c.bf16 %v1551, %v1551
    %v1556 = vld [vmem:[#allocation8] sm:$0xf]
    %v1557 = vld [vmem:[#allocation8 + $0x4] sm:$0xf]
    %v1558 = vld [vmem:[#allocation8 + $0x8] sm:$0xf]
    %v1559 = vld [vmem:[#allocation8 + $0xc] sm:$0xf]
    %v1560 = vld [vmem:[#allocation8 + $0x10] sm:$0xf]
    %v1561 = vld [vmem:[#allocation8 + $0x14] sm:$0xf]
    %v1562 = vld [vmem:[#allocation8 + $0x18] sm:$0xf]
    %v1563 = vld [vmem:[#allocation8 + $0x1c] sm:$0xf]
    %v1564 = vld [vmem:[#allocation8 + $0x20] sm:$0xf]
    %v1565 = vld [vmem:[#allocation8 + $0x24] sm:$0xf]
    %v1566 = vld [vmem:[#allocation8 + $0x28] sm:$0xf]
    %v1567 = vld [vmem:[#allocation8 + $0x2c] sm:$0xf]
    %v1568 = vld [vmem:[#allocation8 + $0x30] sm:$0xf]
    %v1569 = vld [vmem:[#allocation8 + $0x34] sm:$0xf]
    %v1570 = vld [vmem:[#allocation8 + $0x38] sm:$0xf]
    %v1571 = vld [vmem:[#allocation8 + $0x3c] sm:$0xf]
    %v1572 = vld [vmem:[#allocation8 + $0x40] sm:$0xf]
    %v1573 = vld [vmem:[#allocation8 + $0x44] sm:$0xf]
    %v1574 = vld [vmem:[#allocation8 + $0x48] sm:$0xf]
    %v1575 = vld [vmem:[#allocation8 + $0x4c] sm:$0xf]
    %v1576 = vld [vmem:[#allocation8 + $0x50] sm:$0xf]
    %v1577 = vld [vmem:[#allocation8 + $0x54] sm:$0xf]
    %v1578 = vld [vmem:[#allocation8 + $0x58] sm:$0xf]
    %v1579 = vld [vmem:[#allocation8 + $0x5c] sm:$0xf]
    %v1580 = vld [vmem:[#allocation8 + $0x60] sm:$0xf]
    %v1581 = vld [vmem:[#allocation8 + $0x64] sm:$0xf]
    %v1582 = vld [vmem:[#allocation8 + $0x68] sm:$0xf]
    %v1583 = vld [vmem:[#allocation8 + $0x6c] sm:$0xf]
    %v1584 = vld [vmem:[#allocation8 + $0x70] sm:$0xf]
    %v1585 = vld [vmem:[#allocation8 + $0x74] sm:$0xf]
    %v1586 = vld [vmem:[#allocation8 + $0x78] sm:$0xf]
    %v1587 = vld [vmem:[#allocation8 + $0x7c] sm:$0xf]
    %v1588 = vld [vmem:[#allocation8 + $0x80] sm:$0xf]
    %v1589 = vld [vmem:[#allocation8 + $0x84] sm:$0xf]
    %v1590 = vld [vmem:[#allocation8 + $0x88] sm:$0xf]
    %v1591 = vld [vmem:[#allocation8 + $0x8c] sm:$0xf]
    %v1592 = vld [vmem:[#allocation8 + $0x90] sm:$0xf]
    %v1593 = vld [vmem:[#allocation8 + $0x94] sm:$0xf]
    %v1594 = vld [vmem:[#allocation8 + $0x98] sm:$0xf]
    %v1595 = vld [vmem:[#allocation8 + $0x9c] sm:$0xf]
    %v1596 = vld [vmem:[#allocation8 + $0xa0] sm:$0xf]
    %v1597 = vld [vmem:[#allocation8 + $0xa4] sm:$0xf]
    %v1598 = vld [vmem:[#allocation8 + $0xa8] sm:$0xf]
    %v1599 = vld [vmem:[#allocation8 + $0xac] sm:$0xf]
    %v1600 = vld [vmem:[#allocation8 + $0xb0] sm:$0xf]
    %v1601 = vld [vmem:[#allocation8 + $0xb4] sm:$0xf]
    %v1602 = vld [vmem:[#allocation8 + $0xb8] sm:$0xf]
    %v1603 = vld [vmem:[#allocation8 + $0xbc] sm:$0xf]
    %v1604 = vld [vmem:[#allocation8 + $0xc0] sm:$0xf]
    %v1605 = vld [vmem:[#allocation8 + $0xc4] sm:$0xf]
    %v1606 = vld [vmem:[#allocation8 + $0xc8] sm:$0xf]
    %v1607 = vld [vmem:[#allocation8 + $0xcc] sm:$0xf]
    %v1608 = vld [vmem:[#allocation8 + $0xd0] sm:$0xf]
    %v1609 = vld [vmem:[#allocation8 + $0xd4] sm:$0xf]
    %v1610 = vld [vmem:[#allocation8 + $0xd8] sm:$0xf]
    %v1611 = vld [vmem:[#allocation8 + $0xdc] sm:$0xf]
    %v1612 = vld [vmem:[#allocation8 + $0xe0] sm:$0xf]
    %v1613 = vld [vmem:[#allocation8 + $0xe4] sm:$0xf]
    %v1614 = vld [vmem:[#allocation8 + $0xe8] sm:$0xf]
    %v1615 = vld [vmem:[#allocation8 + $0xec] sm:$0xf]
    %v1616 = vld [vmem:[#allocation8 + $0xf0] sm:$0xf]
    %v1617 = vld [vmem:[#allocation8 + $0xf4] sm:$0xf]
    %v1618 = vld [vmem:[#allocation8 + $0xf8] sm:$0xf]
    %v1619 = vld [vmem:[#allocation8 + $0xfc] sm:$0xf]
    %v1620 = vld [vmem:[%s4] sm:$0x1]
    %v1622 = vlaneseq
    %v1623 = vshrl.u32 %v1622, 7
    %v1624 = vsub.s32 0, %v1623
    %v1625 = vrot.slane %v1620, %v1624
    %v1691 = vunpack.c.l.b16 %v1556
    %v1692 = vunpack.c.l.b16 %v1557
    %v1693 = vunpack.c.l.b16 %v1558
    %v1694 = vunpack.c.l.b16 %v1559
    %v1695 = vunpack.c.l.b16 %v1560
    %v1696 = vunpack.c.l.b16 %v1561
    %v1697 = vunpack.c.l.b16 %v1562
    %v1698 = vunpack.c.l.b16 %v1563
    %v1699 = vunpack.c.l.b16 %v1564
    %v1700 = vunpack.c.l.b16 %v1565
    %v1701 = vunpack.c.l.b16 %v1566
    %v1702 = vunpack.c.l.b16 %v1567
    %v1703 = vunpack.c.l.b16 %v1568
    %v1704 = vunpack.c.l.b16 %v1569
    %v1705 = vunpack.c.l.b16 %v1570
    %v1706 = vunpack.c.l.b16 %v1571
    %v1707 = vunpack.c.l.b16 %v1572
    %v1708 = vunpack.c.l.b16 %v1573
    %v1709 = vunpack.c.l.b16 %v1574
    %v1710 = vunpack.c.l.b16 %v1575
    %v1711 = vunpack.c.l.b16 %v1576
    %v1712 = vunpack.c.l.b16 %v1577
    %v1713 = vunpack.c.l.b16 %v1578
    %v1714 = vunpack.c.l.b16 %v1579
    %v1715 = vunpack.c.l.b16 %v1580
    %v1716 = vunpack.c.l.b16 %v1581
    %v1717 = vunpack.c.l.b16 %v1582
    %v1718 = vunpack.c.l.b16 %v1583
    %v1719 = vunpack.c.l.b16 %v1584
    %v1720 = vunpack.c.l.b16 %v1585
    %v1721 = vunpack.c.l.b16 %v1586
    %v1722 = vunpack.c.l.b16 %v1587
    %v1723 = vunpack.c.l.b16 %v1588
    %v1724 = vunpack.c.l.b16 %v1589
    %v1725 = vunpack.c.l.b16 %v1590
    %v1726 = vunpack.c.l.b16 %v1591
    %v1727 = vunpack.c.l.b16 %v1592
    %v1728 = vunpack.c.l.b16 %v1593
    %v1729 = vunpack.c.l.b16 %v1594
    %v1730 = vunpack.c.l.b16 %v1595
    %v1731 = vunpack.c.l.b16 %v1596
    %v1732 = vunpack.c.l.b16 %v1597
    %v1733 = vunpack.c.l.b16 %v1598
    %v1734 = vunpack.c.l.b16 %v1599
    %v1735 = vunpack.c.l.b16 %v1600
    %v1736 = vunpack.c.l.b16 %v1601
    %v1737 = vunpack.c.l.b16 %v1602
    %v1738 = vunpack.c.l.b16 %v1603
    %v1739 = vunpack.c.l.b16 %v1604
    %v1740 = vunpack.c.l.b16 %v1605
    %v1741 = vunpack.c.l.b16 %v1606
    %v1742 = vunpack.c.l.b16 %v1607
    %v1743 = vunpack.c.l.b16 %v1608
    %v1744 = vunpack.c.l.b16 %v1609
    %v1745 = vunpack.c.l.b16 %v1610
    %v1746 = vunpack.c.l.b16 %v1611
    %v1747 = vunpack.c.l.b16 %v1612
    %v1748 = vunpack.c.l.b16 %v1613
    %v1749 = vunpack.c.l.b16 %v1614
    %v1750 = vunpack.c.l.b16 %v1615
    %v1751 = vunpack.c.l.b16 %v1616
    %v1752 = vunpack.c.l.b16 %v1617
    %v1753 = vunpack.c.l.b16 %v1618
    %v1754 = vunpack.c.l.b16 %v1619
    %v1755 = vpack.c.b16 %v1692, %v1691
    %v1756 = vpack.c.b16 %v1694, %v1693
    %v1757 = vpack.c.b16 %v1696, %v1695
    %v1758 = vpack.c.b16 %v1698, %v1697
    %v1759 = vpack.c.b16 %v1700, %v1699
    %v1760 = vpack.c.b16 %v1702, %v1701
    %v1761 = vpack.c.b16 %v1704, %v1703
    %v1762 = vpack.c.b16 %v1706, %v1705
    %v1763 = vpack.c.b16 %v1708, %v1707
    %v1764 = vpack.c.b16 %v1710, %v1709
    %v1765 = vpack.c.b16 %v1712, %v1711
    %v1766 = vpack.c.b16 %v1714, %v1713
    %v1767 = vpack.c.b16 %v1716, %v1715
    %v1768 = vpack.c.b16 %v1718, %v1717
    %v1769 = vpack.c.b16 %v1720, %v1719
    %v1770 = vpack.c.b16 %v1722, %v1721
    %v1771 = vpack.c.b16 %v1724, %v1723
    %v1772 = vpack.c.b16 %v1726, %v1725
    %v1773 = vpack.c.b16 %v1728, %v1727
    %v1774 = vpack.c.b16 %v1730, %v1729
    %v1775 = vpack.c.b16 %v1732, %v1731
    %v1776 = vpack.c.b16 %v1734, %v1733
    %v1777 = vpack.c.b16 %v1736, %v1735
    %v1778 = vpack.c.b16 %v1738, %v1737
    %v1779 = vpack.c.b16 %v1740, %v1739
    %v1780 = vpack.c.b16 %v1742, %v1741
    %v1781 = vpack.c.b16 %v1744, %v1743
    %v1782 = vpack.c.b16 %v1746, %v1745
    %v1783 = vpack.c.b16 %v1748, %v1747
    %v1784 = vpack.c.b16 %v1750, %v1749
    %v1785 = vpack.c.b16 %v1752, %v1751
    %v1786 = vpack.c.b16 %v1754, %v1753
    %1819 = vmatprep.subr.bf16.mxu0 0
    %1820 = vmatpush1.bf16.msra.mxu0 %v1762
    %1821 = vmatprep.subr.bf16.mxu0 0
    %1822 = vmatpush1.bf16.msra.mxu0 %v1761
    %1823 = vmatprep.subr.bf16.mxu0 0
    %1824 = vmatpush1.bf16.msra.mxu0 %v1760
    %1825 = vmatprep.subr.bf16.mxu0 0
    %1826 = vmatpush1.bf16.msra.mxu0 %v1759
    %1827 = vmatprep.subr.bf16.mxu0 0
    %1828 = vmatpush1.bf16.msra.mxu0 %v1758
    %1829 = vmatprep.subr.bf16.mxu0 0
    %1830 = vmatpush1.bf16.msra.mxu0 %v1757
    %1831 = vmatprep.subr.bf16.mxu0 0
    %1832 = vmatpush1.bf16.msra.mxu0 %v1756
    %1833 = vmatprep.subr.bf16.mxu0 0
    %1834 = vmatpush1.bf16.msra.mxu0 %v1755
    %1835 = vmatprep.subr.bf16.mxu0 0
    %1836 = vmatpush2.bf16.msra.mxu0 %v1770
    %1837 = vmatprep.subr.bf16.mxu0 0
    %1838 = vmatpush2.bf16.msra.mxu0 %v1769
    %1839 = vmatprep.subr.bf16.mxu0 0
    %1840 = vmatpush2.bf16.msra.mxu0 %v1768
    %1841 = vmatprep.subr.bf16.mxu0 0
    %1842 = vmatpush2.bf16.msra.mxu0 %v1767
    %1843 = vmatprep.subr.bf16.mxu0 0
    %1844 = vmatpush2.bf16.msra.mxu0 %v1766
    %1845 = vmatprep.subr.bf16.mxu0 0
    %1846 = vmatpush2.bf16.msra.mxu0 %v1765
    %1847 = vmatprep.subr.bf16.mxu0 0
    %1848 = vmatpush2.bf16.msra.mxu0 %v1764
    %1849 = vmatprep.subr.bf16.mxu0 0
    %1850 = vmatpush2.bf16.msra.mxu0 %v1763
    %1851 = vmatprep.mubr.bf16.mxu0 %v1553
    %1852 = vmatmul.mubr.bf16.gmra.mxu0 %v1552
    %v1853 = vpop.f32.mrf.mxu0
    %v1854 = vadd.f32 %v1625, %v1853
    %v1855 = vpop.f32.mrf.mxu0
    %v1856 = vpop.f32.mrf.mxu0
    %v1857 = vpop.f32.mrf.mxu0
    %1858 = vdwg.mxu0
    %1859 = vmatprep.subr.bf16.mxu0 0
    %1860 = vmatpush1.bf16.msra.mxu0 %v1778
    %1861 = vmatprep.subr.bf16.mxu0 0
    %1862 = vmatpush1.bf16.msra.mxu0 %v1777
    %1863 = vmatprep.subr.bf16.mxu0 0
    %1864 = vmatpush1.bf16.msra.mxu0 %v1776
    %1865 = vmatprep.subr.bf16.mxu0 0
    %1866 = vmatpush1.bf16.msra.mxu0 %v1775
    %1867 = vmatprep.subr.bf16.mxu0 0
    %1868 = vmatpush1.bf16.msra.mxu0 %v1774
    %1869 = vmatprep.subr.bf16.mxu0 0
    %1870 = vmatpush1.bf16.msra.mxu0 %v1773
    %1871 = vmatprep.subr.bf16.mxu0 0
    %1872 = vmatpush1.bf16.msra.mxu0 %v1772
    %1873 = vmatprep.subr.bf16.mxu0 0
    %1874 = vmatpush1.bf16.msra.mxu0 %v1771
    %1875 = vmatprep.subr.bf16.mxu0 0
    %1876 = vmatpush2.bf16.msra.mxu0 %v1786
    %1877 = vmatprep.subr.bf16.mxu0 0
    %1878 = vmatpush2.bf16.msra.mxu0 %v1785
    %1879 = vmatprep.subr.bf16.mxu0 0
    %1880 = vmatpush2.bf16.msra.mxu0 %v1784
    %1881 = vmatprep.subr.bf16.mxu0 0
    %1882 = vmatpush2.bf16.msra.mxu0 %v1783
    %1883 = vmatprep.subr.bf16.mxu0 0
    %1884 = vmatpush2.bf16.msra.mxu0 %v1782
    %1885 = vmatprep.subr.bf16.mxu0 0
    %1886 = vmatpush2.bf16.msra.mxu0 %v1781
    %1887 = vmatprep.subr.bf16.mxu0 0
    %1888 = vmatpush2.bf16.msra.mxu0 %v1780
    %1889 = vmatprep.subr.bf16.mxu0 0
    %1890 = vmatpush2.bf16.msra.mxu0 %v1779
    %1891 = vmatprep.mubr.bf16.mxu0 %v1555
    %1892 = vmatmul.mubr.bf16.gmra.mxu0 %v1554
    %v1893 = vpop.f32.mrf.mxu0
    %v1894 = vadd.f32 %v1854, %v1893
    %v1895 = vpop.f32.mrf.mxu0
    %v1896 = vpop.f32.mrf.mxu0
    %v1897 = vpop.f32.mrf.mxu0
    %1898 = vdwg.mxu0
    %vm1899 = vcmask 1041408
    %v1900 = vsel %vm1899, %v1894, -inf
    %1901 = vmax.xlane.f32.xlu0 %v1900
    %v1902 = vpop.xlane.xlu0 %1901
    %v1903 = vsub.f32 %v1894, %v1902
    %v1904 = vmul.f32 %v1903, 1.442695
    %v1905 = vpow.pop %v1904
    %v1906 = vsel %vm1899, %v1905, 0.0
    %1907 = vadd.xlane.f32.xlu0 %v1906
    %v1908 = vpop.xlane.xlu0 %1907
    %v1909 = vlog2.pop %v1908
    %v1910 = vmul.f32 %v1909, 0.6931472
    %v1911 = vsub.f32 %v1903, %v1910
    %1912 = vst [vmem:[#allocation10] sm:$0x3] %v1911
    // Predicated region
    $region38: #{tpu_custom_call.1} parent=1 // pred_check
      _
    $region39: #{tpu_custom_call.1} parent=1 // pred_check_branch
      %1914 = sbr.rel (0) target = $region41
    $region40: #{tpu_custom_call.1} parent=1 // pred_region
      %s1916 = ssub.s32 32, 32
      %1917 = vsyncadd [#allocation4], %s1916
      %s1919 = sshll.u32 [#allocation10], 4
      %s1920 = int_to_ptr.vmem [resolvable:$true] %s1919
      %1922 = dma.vmem_to_hbm [thread:$0]  %s1920, 32, %s5, [#allocation4]
    $region41: #{tpu_custom_call.1} parent=1 // pred_fallthru
      _
    // Predicated region
    $region42: #{tpu_custom_call.1} parent=1 // pred_check
      _
    $region43: #{tpu_custom_call.1} parent=1 // pred_check_branch
      %1924 = sbr.rel (0) target = $region45
    $region44: #{tpu_custom_call.1} parent=1 // pred_region
      %1925 = dma.done [#allocation4], 32
    $region45: #{tpu_custom_call.1} parent=1 // pred_fallthru
      _
    %1926 = vsyncpa [#allocation3], 1
    %1927 = vsyncpa [#allocation6], 1
    %1928 = vsyncpa [#allocation9], 1
    %1929 = vsyncpa [#allocation4], 1

</llo_original>
